<compile_context>
chip_gen: v7x
topology: tpu7x:2x2x1
jax: 0.10.0
libtpu: 0.0.40
codegen_flags: <defaults>
</compile_context>

<pallas_src>
import jax
import jax.numpy as jnp
import numpy as np
from jax import lax
from jax.experimental import pallas as pl
from jax.experimental.pallas import tpu as pltpu


def _lstm_recurrence_kernel(g0_ref, whh0_ref, w1_ref, b1_ref, out_ref,
                            h0, c0, h1, c1, hcat):
    """Sequential 2-layer LSTM recurrence over one time tile.

    g0_ref  : (Tt, B, 4H) f32   precomputed layer-0 gate pre-activations.
    whh0_ref: (H, 4H)     bf16  layer-0 recurrent weights.
    w1_ref  : (2H, 4H)    bf16  layer-1 stacked [Wih1; Whh1].
    b1_ref  : (1, 4H)     f32   layer-1 summed bias.
    out_ref : (B, H)      f32   final h of last layer.
    h0,c0,h1,c1 : (B, H) f32 VMEM state (persists across grid steps).
    hcat    : (B, 2H) bf16 VMEM staging buffer for the fused layer-1 operand.
    """
    tb = pl.program_id(0)
    Tt = g0_ref.shape[0]
    H = h0.shape[-1]

    @pl.when(tb == 0)
    def _():
        h0[...] = jnp.zeros_like(h0)
        c0[...] = jnp.zeros_like(c0)
        h1[...] = jnp.zeros_like(h1)
        c1[...] = jnp.zeros_like(c1)

    whh0 = whh0_ref[...]     # (H, 4H)  bf16
    w1 = w1_ref[...]         # (2H, 4H) bf16
    b1 = b1_ref[...]         # (1, 4H)  f32

    def gates_to_hc(gates, c):
        # Elementwise gate math in f32 (v5e-safe). Note: with H < 128 the gate
        # slices are lane-unaligned; acceptable at these sizes.
        i = jax.nn.sigmoid(gates[:, 0 * H:1 * H])
        f = jax.nn.sigmoid(gates[:, 1 * H:2 * H])
        g = jnp.tanh(gates[:, 2 * H:3 * H])
        o = jax.nn.sigmoid(gates[:, 3 * H:4 * H])
        c_new = f * c + i * g
        h_new = o * jnp.tanh(c_new)
        return h_new, c_new

    def step(s, carry):
        h0v, c0v, h1v, c1v = carry
        # Layer 0: input projection precomputed; only the recurrent dot remains.
        gates0 = g0_ref[s] + jnp.dot(h0v.astype(jnp.bfloat16), whh0,
                                     preferred_element_type=jnp.float32)
        h0v, c0v = gates_to_hc(gates0, c0v)
        # Layer 1: one fused MXU push over [h0_new | h1_prev].
        hcat[:, 0:H] = h0v.astype(jnp.bfloat16)
        hcat[:, H:2 * H] = h1v.astype(jnp.bfloat16)
        gates1 = jnp.dot(hcat[...], w1,
                         preferred_element_type=jnp.float32) + b1
        h1v, c1v = gates_to_hc(gates1, c1v)
        return (h0v, c0v, h1v, c1v)

    carry = (h0[...], c0[...], h1[...], c1[...])
    carry = lax.fori_loop(0, Tt, step, carry, unroll=True)
    h0[...], c0[...], h1[...], c1[...] = carry

    @pl.when(tb == pl.num_programs(0) - 1)
    def _():
        out_ref[...] = h1[...]


def _pick_time_tile(T, max_tt=32):
    """Largest divisor of T that is <= max_tt (avoids padded garbage blocks)."""
    tt = min(T, max_tt)
    while T % tt:
        tt -= 1
    return tt


def temporal_encoder_forward(x_btd, params):
    """x_btd: (B, T, D) f32 (batch_first, like PyTorch). Returns (B, H) f32."""
    wih0_t, whh0_t, b0, wih1_t, whh1_t, b1 = params
    B, T, D = x_btd.shape
    H = whh0_t.shape[0]
    Tt = _pick_time_tile(T)

    # Hoisted layer-0 input projection for all timesteps; 'tbg' output layout
    # folds the time-major transpose into this single big matmul.
    g0 = jnp.einsum('btd,dg->tbg', x_btd, wih0_t) + b0            # (T, B, 4H)

    # Recurrent weights in bf16; layer-1 input+recurrent weights stacked.
    whh0_b = whh0_t.astype(jnp.bfloat16)                           # (H, 4H)
    w1_b = jnp.concatenate([wih1_t, whh1_t],
                           axis=0).astype(jnp.bfloat16)            # (2H, 4H)

    grid_spec = pltpu.PrefetchScalarGridSpec(
        num_scalar_prefetch=0,
        grid=(T // Tt,),
        in_specs=[
            pl.BlockSpec((Tt, B, 4 * H), lambda t: (t, 0, 0)),
            pl.BlockSpec((H, 4 * H), lambda t: (0, 0)),
            pl.BlockSpec((2 * H, 4 * H), lambda t: (0, 0)),
            pl.BlockSpec((1, 4 * H), lambda t: (0, 0)),
        ],
        out_specs=pl.BlockSpec((B, H), lambda t: (0, 0)),
        scratch_shapes=[pltpu.VMEM((B, H), jnp.float32)] * 4
                       + [pltpu.VMEM((B, 2 * H), jnp.bfloat16)],
    )
    return pl.pallas_call(
        _lstm_recurrence_kernel,
        out_shape=jax.ShapeDtypeStruct((B, H), jnp.float32),
        grid_spec=grid_spec,
        compiler_params=pltpu.CompilerParams(
            dimension_semantics=("arbitrary",)),
    )(g0, whh0_b, w1_b, b1)


def init_params(key, input_dim, hidden_dim):
    """Deterministic init matching PyTorch LSTM shapes (uniform +/- 1/sqrt(H))."""
    bound = 1.0 / np.sqrt(hidden_dim)
    ks = jax.random.split(key, 8)
    u = lambda k, shape: jax.random.uniform(k, shape, jnp.float32, -bound, bound)
    wih0 = u(ks[0], (4 * hidden_dim, input_dim))
    whh0 = u(ks[1], (4 * hidden_dim, hidden_dim))
    bih0 = u(ks[2], (4 * hidden_dim,))
    bhh0 = u(ks[3], (4 * hidden_dim,))
    wih1 = u(ks[4], (4 * hidden_dim, hidden_dim))
    whh1 = u(ks[5], (4 * hidden_dim, hidden_dim))
    bih1 = u(ks[6], (4 * hidden_dim,))
    bhh1 = u(ks[7], (4 * hidden_dim,))
    return (wih0.T, whh0.T, (bih0 + bhh0)[None, :],
            wih1.T, whh1.T, (bih1 + bhh1)[None, :])


def reference_forward_mirror(x_btd, params):
    """Pure-JAX reference mirroring the kernel's mixed-precision math."""
    wih0_t, whh0_t, b0, wih1_t, whh1_t, b1 = params
    B = x_btd.shape[0]
    H = whh0_t.shape[0]
    whh0_b = whh0_t.astype(jnp.bfloat16)
    w1_b = jnp.concatenate([wih1_t, whh1_t], axis=0).astype(jnp.bfloat16)
    g0_all = jnp.einsum('btd,dg->tbg', x_btd, wih0_t) + b0

    def gates_to_hc(gates, c):
        i = jax.nn.sigmoid(gates[:, 0 * H:1 * H])
        f = jax.nn.sigmoid(gates[:, 1 * H:2 * H])
        g = jnp.tanh(gates[:, 2 * H:3 * H])
        o = jax.nn.sigmoid(gates[:, 3 * H:4 * H])
        c_new = f * c + i * g
        return o * jnp.tanh(c_new), c_new

    def step(carry, g0_t):
        h0, c0, h1, c1 = carry
        gates0 = g0_t + jnp.dot(h0.astype(jnp.bfloat16), whh0_b,
                                preferred_element_type=jnp.float32)
        h0, c0 = gates_to_hc(gates0, c0)
        inp1 = jnp.concatenate([h0, h1], axis=-1).astype(jnp.bfloat16)
        gates1 = jnp.dot(inp1, w1_b, preferred_element_type=jnp.float32) + b1
        h1, c1 = gates_to_hc(gates1, c1)
        return (h0, c0, h1, c1), None

    z = jnp.zeros((B, H), jnp.float32)
    (h0, c0, h1, c1), _ = lax.scan(step, (z, z, z, z), g0_all)
    return h1


def reference_forward_f32(x_btd, params):
    """Pure f32 reference with exact torch.nn.LSTM forward semantics."""
    wih0_t, whh0_t, b0, wih1_t, whh1_t, b1 = params
    B = x_btd.shape[0]
    H = whh0_t.shape[0]

    def cell(h, c, inp, wih, whh, b):
        g = inp @ wih + h @ whh + b
        i = jax.nn.sigmoid(g[:, 0 * H:1 * H])
        f = jax.nn.sigmoid(g[:, 1 * H:2 * H])
        gg = jnp.tanh(g[:, 2 * H:3 * H])
        o = jax.nn.sigmoid(g[:, 3 * H:4 * H])
        c_new = f * c + i * gg
        return o * jnp.tanh(c_new), c_new

    def step(carry, x_t):
        h0, c0, h1, c1 = carry
        h0, c0 = cell(h0, c0, x_t, wih0_t, whh0_t, b0)
        h1, c1 = cell(h1, c1, h0, wih1_t, whh1_t, b1)
        return (h0, c0, h1, c1), None

    z = jnp.zeros((B, H), jnp.float32)
    (h0, c0, h1, c1), _ = lax.scan(step, (z, z, z, z),
                                   jnp.transpose(x_btd, (1, 0, 2)))
    return h1


if __name__ == "__main__":
    B, T, D, H = 2, 8, 16, 32
    key = jax.random.PRNGKey(0)
    kx, kx2, kp = jax.random.split(key, 3)
    x = jax.random.normal(kx, (B, T, D), dtype=jnp.float32)
    params = init_params(kp, D, H)

    fwd = jax.jit(temporal_encoder_forward)

    # Case 1: T == time tile (single grid step).
    out = jax.block_until_ready(fwd(x, params))
    ref_mirror = reference_forward_mirror(x, params)
    ref_f32 = reference_forward_f32(x, params)
    np.testing.assert_allclose(np.asarray(out), np.asarray(ref_mirror),
                               rtol=1e-4, atol=1e-4)
    np.testing.assert_allclose(np.asarray(out), np.asarray(ref_f32),
                               rtol=0, atol=5e-2)   # bf16 recurrent weights

    # Case 2: longer sequence -> multiple grid steps (state carried in VMEM).
    T2 = 64
    x2 = jax.random.normal(kx2, (B, T2, D), dtype=jnp.float32)
    out2 = jax.block_until_ready(fwd(x2, params))
    ref2 = reference_forward_mirror(x2, params)
    np.testing.assert_allclose(np.asarray(out2), np.asarray(ref2),
                               rtol=1e-4, atol=1e-4)

    print("KERNEL_OK")
</pallas_src>

<mosaic_0001>
module attributes {stable_mosaic.version = 11 : i64} {
  func.func @_lstm_recurrence_kernel(%arg0: i32, %arg1: memref<8x2x128xf32, #tpu.memory_space<vmem>>, %arg2: memref<32x128xbf16, #tpu.memory_space<vmem>>, %arg3: memref<64x128xbf16, #tpu.memory_space<vmem>>, %arg4: memref<1x128xf32, #tpu.memory_space<vmem>>, %arg5: memref<2x32xf32, #tpu.memory_space<vmem>>, %arg6: memref<2x32xf32, #tpu.memory_space<vmem>>, %arg7: memref<2x32xf32, #tpu.memory_space<vmem>>, %arg8: memref<2x32xf32, #tpu.memory_space<vmem>>, %arg9: memref<2x32xf32, #tpu.memory_space<vmem>>, %arg10: memref<2x64xbf16, #tpu.memory_space<vmem>>) attributes {dimension_semantics = [#tpu.dimension_semantics<arbitrary>], iteration_bounds = array<i64: 1>, scalar_prefetch = 0 : i64, scratch_operands = 5 : i64, tpu.core_type = #tpu.core_type<tc>, window_params = [{transform_indices = @transform_0, window_bounds = array<i64: 8, 2, 128>}, {pipeline_mode = #tpu.pipeline_mode<synchronous>, transform_indices = @transform_1, window_bounds = array<i64: 32, 128>}, {pipeline_mode = #tpu.pipeline_mode<synchronous>, transform_indices = @transform_2, window_bounds = array<i64: 64, 128>}, {pipeline_mode = #tpu.pipeline_mode<synchronous>, transform_indices = @transform_3, window_bounds = array<i64: 1, 128>}, {pipeline_mode = #tpu.pipeline_mode<synchronous>, transform_indices = @transform_4, window_bounds = array<i64: 2, 32>}]} {
    %c0_i32 = arith.constant 0 : i32
    %0 = arith.cmpi eq, %arg0, %c0_i32 : i32
    %1 = arith.extui %0 : i1 to i32
    %c0_i32_0 = arith.constant 0 : i32
    %2 = arith.cmpi ne, %1, %c0_i32_0 : i32
    scf.if %2 {
      %cst_151 = arith.constant 0.000000e+00 : f32
      %529 = vector.broadcast %cst_151 : f32 to vector<2x32xf32>
      %c0_152 = arith.constant 0 : index
      %c0_153 = arith.constant 0 : index
      %530 = vector.load %arg6[%c0_152, %c0_153] : memref<2x32xf32, #tpu.memory_space<vmem>>, vector<2x32xf32>
      tpu.vector_store %arg6[%c0_152, %c0_153], %529 {strides = array<i32>} : memref<2x32xf32, #tpu.memory_space<vmem>>, vector<2x32xf32>,
      %cst_154 = arith.constant 0.000000e+00 : f32
      %531 = vector.broadcast %cst_154 : f32 to vector<2x32xf32>
      %c0_155 = arith.constant 0 : index
      %c0_156 = arith.constant 0 : index
      %532 = vector.load %arg7[%c0_155, %c0_156] : memref<2x32xf32, #tpu.memory_space<vmem>>, vector<2x32xf32>
      tpu.vector_store %arg7[%c0_155, %c0_156], %531 {strides = array<i32>} : memref<2x32xf32, #tpu.memory_space<vmem>>, vector<2x32xf32>,
      %cst_157 = arith.constant 0.000000e+00 : f32
      %533 = vector.broadcast %cst_157 : f32 to vector<2x32xf32>
      %c0_158 = arith.constant 0 : index
      %c0_159 = arith.constant 0 : index
      %534 = vector.load %arg8[%c0_158, %c0_159] : memref<2x32xf32, #tpu.memory_space<vmem>>, vector<2x32xf32>
      tpu.vector_store %arg8[%c0_158, %c0_159], %533 {strides = array<i32>} : memref<2x32xf32, #tpu.memory_space<vmem>>, vector<2x32xf32>,
      %cst_160 = arith.constant 0.000000e+00 : f32
      %535 = vector.broadcast %cst_160 : f32 to vector<2x32xf32>
      %c0_161 = arith.constant 0 : index
      %c0_162 = arith.constant 0 : index
      %536 = vector.load %arg9[%c0_161, %c0_162] : memref<2x32xf32, #tpu.memory_space<vmem>>, vector<2x32xf32>
      tpu.vector_store %arg9[%c0_161, %c0_162], %535 {strides = array<i32>} : memref<2x32xf32, #tpu.memory_space<vmem>>, vector<2x32xf32>,
    } else {
    }
    %c0 = arith.constant 0 : index
    %c0_1 = arith.constant 0 : index
    %3 = vector.load %arg2[%c0, %c0_1] : memref<32x128xbf16, #tpu.memory_space<vmem>>, vector<32x128xbf16>
    %c0_2 = arith.constant 0 : index
    %c0_3 = arith.constant 0 : index
    %4 = vector.load %arg3[%c0_2, %c0_3] : memref<64x128xbf16, #tpu.memory_space<vmem>>, vector<64x128xbf16>
    %c0_4 = arith.constant 0 : index
    %c0_5 = arith.constant 0 : index
    %5 = vector.load %arg4[%c0_4, %c0_5] : memref<1x128xf32, #tpu.memory_space<vmem>>, vector<1x128xf32>
    %c0_6 = arith.constant 0 : index
    %c0_7 = arith.constant 0 : index
    %6 = vector.load %arg6[%c0_6, %c0_7] : memref<2x32xf32, #tpu.memory_space<vmem>>, vector<2x32xf32>
    %c0_8 = arith.constant 0 : index
    %c0_9 = arith.constant 0 : index
    %7 = vector.load %arg7[%c0_8, %c0_9] : memref<2x32xf32, #tpu.memory_space<vmem>>, vector<2x32xf32>
    %c0_10 = arith.constant 0 : index
    %c0_11 = arith.constant 0 : index
    %8 = vector.load %arg8[%c0_10, %c0_11] : memref<2x32xf32, #tpu.memory_space<vmem>>, vector<2x32xf32>
    %c0_12 = arith.constant 0 : index
    %c0_13 = arith.constant 0 : index
    %9 = vector.load %arg9[%c0_12, %c0_13] : memref<2x32xf32, #tpu.memory_space<vmem>>, vector<2x32xf32>
    %c0_i32_14 = arith.constant 0 : i32
    %10 = arith.index_cast %c0_i32_14 : i32 to index
    %c0_15 = arith.constant 0 : index
    %c0_16 = arith.constant 0 : index
    %11 = vector.load %arg1[%10, %c0_15, %c0_16] : memref<8x2x128xf32, #tpu.memory_space<vmem>>, vector<1x2x128xf32>
    %12 = vector.shape_cast %11 : vector<1x2x128xf32> to vector<2x128xf32>
    %13 = arith.truncf %6 : vector<2x32xf32> to vector<2x32xbf16>
    %cst = arith.constant dense<0.000000e+00> : vector<2x128xf32>
    %14 = tpu.matmul %13, %3, %cst {dimension_numbers = #tpu.dot_dimension_numbers<[1], [0], [0], [1], [0, 0, 1, 1], [], []>} : vector<2x32xbf16>, vector<32x128xbf16>, vector<2x128xf32> -> vector<2x128xf32>
    %15 = arith.addf %12, %14 : vector<2x128xf32>
    %16 = vector.extract_strided_slice %15 {offsets = [0, 0], sizes = [2, 32], strides = [1, 1]} : vector<2x128xf32> to vector<2x32xf32>
    %17 = arith.negf %16 : vector<2x32xf32>
    %18 = math.exp %17 : vector<2x32xf32>
    %cst_17 = arith.constant 1.000000e+00 : f32
    %19 = vector.broadcast %cst_17 : f32 to vector<2x32xf32>
    %20 = arith.addf %19, %18 : vector<2x32xf32>
    %21 = arith.divf %19, %20 : vector<2x32xf32>
    %22 = vector.extract_strided_slice %15 {offsets = [0, 32], sizes = [2, 32], strides = [1, 1]} : vector<2x128xf32> to vector<2x32xf32>
    %23 = arith.negf %22 : vector<2x32xf32>
    %24 = math.exp %23 : vector<2x32xf32>
    %cst_18 = arith.constant 1.000000e+00 : f32
    %25 = vector.broadcast %cst_18 : f32 to vector<2x32xf32>
    %26 = arith.addf %25, %24 : vector<2x32xf32>
    %27 = arith.divf %25, %26 : vector<2x32xf32>
    %28 = vector.extract_strided_slice %15 {offsets = [0, 64], sizes = [2, 32], strides = [1, 1]} : vector<2x128xf32> to vector<2x32xf32>
    %29 = math.tanh %28 : vector<2x32xf32>
    %30 = vector.extract_strided_slice %15 {offsets = [0, 96], sizes = [2, 32], strides = [1, 1]} : vector<2x128xf32> to vector<2x32xf32>
    %31 = arith.negf %30 : vector<2x32xf32>
    %32 = math.exp %31 : vector<2x32xf32>
    %cst_19 = arith.constant 1.000000e+00 : f32
    %33 = vector.broadcast %cst_19 : f32 to vector<2x32xf32>
    %34 = arith.addf %33, %32 : vector<2x32xf32>
    %35 = arith.divf %33, %34 : vector<2x32xf32>
    %36 = arith.mulf %27, %7 : vector<2x32xf32>
    %37 = arith.mulf %21, %29 : vector<2x32xf32>
    %38 = arith.addf %36, %37 : vector<2x32xf32>
    %39 = math.tanh %38 : vector<2x32xf32>
    %40 = arith.mulf %35, %39 : vector<2x32xf32>
    %41 = arith.truncf %40 : vector<2x32xf32> to vector<2x32xbf16>
    %c0_20 = arith.constant 0 : index
    %c0_21 = arith.constant 0 : index
    %42 = vector.load %arg10[%c0_20, %c0_21] : memref<2x64xbf16, #tpu.memory_space<vmem>>, vector<2x32xbf16>
    tpu.vector_store %arg10[%c0_20, %c0_21], %41 {strides = array<i32>} : memref<2x64xbf16, #tpu.memory_space<vmem>>, vector<2x32xbf16>,
    %43 = arith.truncf %8 : vector<2x32xf32> to vector<2x32xbf16>
    %c0_22 = arith.constant 0 : index
    %c32 = arith.constant 32 : index
    %44 = vector.load %arg10[%c0_22, %c32] : memref<2x64xbf16, #tpu.memory_space<vmem>>, vector<2x32xbf16>
    tpu.vector_store %arg10[%c0_22, %c32], %43 {strides = array<i32>} : memref<2x64xbf16, #tpu.memory_space<vmem>>, vector<2x32xbf16>,
    %c0_23 = arith.constant 0 : index
    %c0_24 = arith.constant 0 : index
    %45 = vector.load %arg10[%c0_23, %c0_24] : memref<2x64xbf16, #tpu.memory_space<vmem>>, vector<2x64xbf16>
    %cst_25 = arith.constant dense<0.000000e+00> : vector<2x128xf32>
    %46 = tpu.matmul %45, %4, %cst_25 {dimension_numbers = #tpu.dot_dimension_numbers<[1], [0], [0], [1], [0, 0, 1, 1], [], []>} : vector<2x64xbf16>, vector<64x128xbf16>, vector<2x128xf32> -> vector<2x128xf32>
    %47 = vector.broadcast %5 : vector<1x128xf32> to vector<2x128xf32>
    %48 = arith.addf %46, %47 : vector<2x128xf32>
    %49 = vector.extract_strided_slice %48 {offsets = [0, 0], sizes = [2, 32], strides = [1, 1]} : vector<2x128xf32> to vector<2x32xf32>
    %50 = arith.negf %49 : vector<2x32xf32>
    %51 = math.exp %50 : vector<2x32xf32>
    %cst_26 = arith.constant 1.000000e+00 : f32
    %52 = vector.broadcast %cst_26 : f32 to vector<2x32xf32>
    %53 = arith.addf %52, %51 : vector<2x32xf32>
    %54 = arith.divf %52, %53 : vector<2x32xf32>
    %55 = vector.extract_strided_slice %48 {offsets = [0, 32], sizes = [2, 32], strides = [1, 1]} : vector<2x128xf32> to vector<2x32xf32>
    %56 = arith.negf %55 : vector<2x32xf32>
    %57 = math.exp %56 : vector<2x32xf32>
    %cst_27 = arith.constant 1.000000e+00 : f32
    %58 = vector.broadcast %cst_27 : f32 to vector<2x32xf32>
    %59 = arith.addf %58, %57 : vector<2x32xf32>
    %60 = arith.divf %58, %59 : vector<2x32xf32>
    %61 = vector.extract_strided_slice %48 {offsets = [0, 64], sizes = [2, 32], strides = [1, 1]} : vector<2x128xf32> to vector<2x32xf32>
    %62 = math.tanh %61 : vector<2x32xf32>
    %63 = vector.extract_strided_slice %48 {offsets = [0, 96], sizes = [2, 32], strides = [1, 1]} : vector<2x128xf32> to vector<2x32xf32>
    %64 = arith.negf %63 : vector<2x32xf32>
    %65 = math.exp %64 : vector<2x32xf32>
    %cst_28 = arith.constant 1.000000e+00 : f32
    %66 = vector.broadcast %cst_28 : f32 to vector<2x32xf32>
    %67 = arith.addf %66, %65 : vector<2x32xf32>
    %68 = arith.divf %66, %67 : vector<2x32xf32>
    %69 = arith.mulf %60, %9 : vector<2x32xf32>
    %70 = arith.mulf %54, %62 : vector<2x32xf32>
    %71 = arith.addf %69, %70 : vector<2x32xf32>
    %72 = math.tanh %71 : vector<2x32xf32>
    %73 = arith.mulf %68, %72 : vector<2x32xf32>
    %c1_i32 = arith.constant 1 : i32
    %74 = arith.index_cast %c1_i32 : i32 to index
    %c0_29 = arith.constant 0 : index
    %c0_30 = arith.constant 0 : index
    %75 = vector.load %arg1[%74, %c0_29, %c0_30] : memref<8x2x128xf32, #tpu.memory_space<vmem>>, vector<1x2x128xf32>
    %76 = vector.shape_cast %75 : vector<1x2x128xf32> to vector<2x128xf32>
    %77 = arith.truncf %40 : vector<2x32xf32> to vector<2x32xbf16>
    %cst_31 = arith.constant dense<0.000000e+00> : vector<2x128xf32>
    %78 = tpu.matmul %77, %3, %cst_31 {dimension_numbers = #tpu.dot_dimension_numbers<[1], [0], [0], [1], [0, 0, 1, 1], [], []>} : vector<2x32xbf16>, vector<32x128xbf16>, vector<2x128xf32> -> vector<2x128xf32>
    %79 = arith.addf %76, %78 : vector<2x128xf32>
    %80 = vector.extract_strided_slice %79 {offsets = [0, 0], sizes = [2, 32], strides = [1, 1]} : vector<2x128xf32> to vector<2x32xf32>
    %81 = arith.negf %80 : vector<2x32xf32>
    %82 = math.exp %81 : vector<2x32xf32>
    %cst_32 = arith.constant 1.000000e+00 : f32
    %83 = vector.broadcast %cst_32 : f32 to vector<2x32xf32>
    %84 = arith.addf %83, %82 : vector<2x32xf32>
    %85 = arith.divf %83, %84 : vector<2x32xf32>
    %86 = vector.extract_strided_slice %79 {offsets = [0, 32], sizes = [2, 32], strides = [1, 1]} : vector<2x128xf32> to vector<2x32xf32>
    %87 = arith.negf %86 : vector<2x32xf32>
    %88 = math.exp %87 : vector<2x32xf32>
    %cst_33 = arith.constant 1.000000e+00 : f32
    %89 = vector.broadcast %cst_33 : f32 to vector<2x32xf32>
    %90 = arith.addf %89, %88 : vector<2x32xf32>
    %91 = arith.divf %89, %90 : vector<2x32xf32>
    %92 = vector.extract_strided_slice %79 {offsets = [0, 64], sizes = [2, 32], strides = [1, 1]} : vector<2x128xf32> to vector<2x32xf32>
    %93 = math.tanh %92 : vector<2x32xf32>
    %94 = vector.extract_strided_slice %79 {offsets = [0, 96], sizes = [2, 32], strides = [1, 1]} : vector<2x128xf32> to vector<2x32xf32>
    %95 = arith.negf %94 : vector<2x32xf32>
    %96 = math.exp %95 : vector<2x32xf32>
    %cst_34 = arith.constant 1.000000e+00 : f32
    %97 = vector.broadcast %cst_34 : f32 to vector<2x32xf32>
    %98 = arith.addf %97, %96 : vector<2x32xf32>
    %99 = arith.divf %97, %98 : vector<2x32xf32>
    %100 = arith.mulf %91, %38 : vector<2x32xf32>
    %101 = arith.mulf %85, %93 : vector<2x32xf32>
    %102 = arith.addf %100, %101 : vector<2x32xf32>
    %103 = math.tanh %102 : vector<2x32xf32>
    %104 = arith.mulf %99, %103 : vector<2x32xf32>
    %105 = arith.truncf %104 : vector<2x32xf32> to vector<2x32xbf16>
    %c0_35 = arith.constant 0 : index
    %c0_36 = arith.constant 0 : index
    %106 = vector.load %arg10[%c0_35, %c0_36] : memref<2x64xbf16, #tpu.memory_space<vmem>>, vector<2x32xbf16>
    tpu.vector_store %arg10[%c0_35, %c0_36], %105 {strides = array<i32>} : memref<2x64xbf16, #tpu.memory_space<vmem>>, vector<2x32xbf16>,
    %107 = arith.truncf %73 : vector<2x32xf32> to vector<2x32xbf16>
    %c0_37 = arith.constant 0 : index
    %c32_38 = arith.constant 32 : index
    %108 = vector.load %arg10[%c0_37, %c32_38] : memref<2x64xbf16, #tpu.memory_space<vmem>>, vector<2x32xbf16>
    tpu.vector_store %arg10[%c0_37, %c32_38], %107 {strides = array<i32>} : memref<2x64xbf16, #tpu.memory_space<vmem>>, vector<2x32xbf16>,
    %c0_39 = arith.constant 0 : index
    %c0_40 = arith.constant 0 : index
    %109 = vector.load %arg10[%c0_39, %c0_40] : memref<2x64xbf16, #tpu.memory_space<vmem>>, vector<2x64xbf16>
    %cst_41 = arith.constant dense<0.000000e+00> : vector<2x128xf32>
    %110 = tpu.matmul %109, %4, %cst_41 {dimension_numbers = #tpu.dot_dimension_numbers<[1], [0], [0], [1], [0, 0, 1, 1], [], []>} : vector<2x64xbf16>, vector<64x128xbf16>, vector<2x128xf32> -> vector<2x128xf32>
    %111 = vector.broadcast %5 : vector<1x128xf32> to vector<2x128xf32>
    %112 = arith.addf %110, %111 : vector<2x128xf32>
    %113 = vector.extract_strided_slice %112 {offsets = [0, 0], sizes = [2, 32], strides = [1, 1]} : vector<2x128xf32> to vector<2x32xf32>
    %114 = arith.negf %113 : vector<2x32xf32>
    %115 = math.exp %114 : vector<2x32xf32>
    %cst_42 = arith.constant 1.000000e+00 : f32
    %116 = vector.broadcast %cst_42 : f32 to vector<2x32xf32>
    %117 = arith.addf %116, %115 : vector<2x32xf32>
    %118 = arith.divf %116, %117 : vector<2x32xf32>
    %119 = vector.extract_strided_slice %112 {offsets = [0, 32], sizes = [2, 32], strides = [1, 1]} : vector<2x128xf32> to vector<2x32xf32>
    %120 = arith.negf %119 : vector<2x32xf32>
    %121 = math.exp %120 : vector<2x32xf32>
    %cst_43 = arith.constant 1.000000e+00 : f32
    %122 = vector.broadcast %cst_43 : f32 to vector<2x32xf32>
    %123 = arith.addf %122, %121 : vector<2x32xf32>
    %124 = arith.divf %122, %123 : vector<2x32xf32>
    %125 = vector.extract_strided_slice %112 {offsets = [0, 64], sizes = [2, 32], strides = [1, 1]} : vector<2x128xf32> to vector<2x32xf32>
    %126 = math.tanh %125 : vector<2x32xf32>
    %127 = vector.extract_strided_slice %112 {offsets = [0, 96], sizes = [2, 32], strides = [1, 1]} : vector<2x128xf32> to vector<2x32xf32>
    %128 = arith.negf %127 : vector<2x32xf32>
    %129 = math.exp %128 : vector<2x32xf32>
    %cst_44 = arith.constant 1.000000e+00 : f32
    %130 = vector.broadcast %cst_44 : f32 to vector<2x32xf32>
    %131 = arith.addf %130, %129 : vector<2x32xf32>
    %132 = arith.divf %130, %131 : vector<2x32xf32>
    %133 = arith.mulf %124, %71 : vector<2x32xf32>
    %134 = arith.mulf %118, %126 : vector<2x32xf32>
    %135 = arith.addf %133, %134 : vector<2x32xf32>
    %136 = math.tanh %135 : vector<2x32xf32>
    %137 = arith.mulf %132, %136 : vector<2x32xf32>
    %c2_i32 = arith.constant 2 : i32
    %138 = arith.index_cast %c2_i32 : i32 to index
    %c0_45 = arith.constant 0 : index
    %c0_46 = arith.constant 0 : index
    %139 = vector.load %arg1[%138, %c0_45, %c0_46] : memref<8x2x128xf32, #tpu.memory_space<vmem>>, vector<1x2x128xf32>
    %140 = vector.shape_cast %139 : vector<1x2x128xf32> to vector<2x128xf32>
    %141 = arith.truncf %104 : vector<2x32xf32> to vector<2x32xbf16>
    %cst_47 = arith.constant dense<0.000000e+00> : vector<2x128xf32>
    %142 = tpu.matmul %141, %3, %cst_47 {dimension_numbers = #tpu.dot_dimension_numbers<[1], [0], [0], [1], [0, 0, 1, 1], [], []>} : vector<2x32xbf16>, vector<32x128xbf16>, vector<2x128xf32> -> vector<2x128xf32>
    %143 = arith.addf %140, %142 : vector<2x128xf32>
    %144 = vector.extract_strided_slice %143 {offsets = [0, 0], sizes = [2, 32], strides = [1, 1]} : vector<2x128xf32> to vector<2x32xf32>
    %145 = arith.negf %144 : vector<2x32xf32>
    %146 = math.exp %145 : vector<2x32xf32>
    %cst_48 = arith.constant 1.000000e+00 : f32
    %147 = vector.broadcast %cst_48 : f32 to vector<2x32xf32>
    %148 = arith.addf %147, %146 : vector<2x32xf32>
    %149 = arith.divf %147, %148 : vector<2x32xf32>
    %150 = vector.extract_strided_slice %143 {offsets = [0, 32], sizes = [2, 32], strides = [1, 1]} : vector<2x128xf32> to vector<2x32xf32>
    %151 = arith.negf %150 : vector<2x32xf32>
    %152 = math.exp %151 : vector<2x32xf32>
    %cst_49 = arith.constant 1.000000e+00 : f32
    %153 = vector.broadcast %cst_49 : f32 to vector<2x32xf32>
    %154 = arith.addf %153, %152 : vector<2x32xf32>
    %155 = arith.divf %153, %154 : vector<2x32xf32>
    %156 = vector.extract_strided_slice %143 {offsets = [0, 64], sizes = [2, 32], strides = [1, 1]} : vector<2x128xf32> to vector<2x32xf32>
    %157 = math.tanh %156 : vector<2x32xf32>
    %158 = vector.extract_strided_slice %143 {offsets = [0, 96], sizes = [2, 32], strides = [1, 1]} : vector<2x128xf32> to vector<2x32xf32>
    %159 = arith.negf %158 : vector<2x32xf32>
    %160 = math.exp %159 : vector<2x32xf32>
    %cst_50 = arith.constant 1.000000e+00 : f32
    %161 = vector.broadcast %cst_50 : f32 to vector<2x32xf32>
    %162 = arith.addf %161, %160 : vector<2x32xf32>
    %163 = arith.divf %161, %162 : vector<2x32xf32>
    %164 = arith.mulf %155, %102 : vector<2x32xf32>
    %165 = arith.mulf %149, %157 : vector<2x32xf32>
    %166 = arith.addf %164, %165 : vector<2x32xf32>
    %167 = math.tanh %166 : vector<2x32xf32>
    %168 = arith.mulf %163, %167 : vector<2x32xf32>
    %169 = arith.truncf %168 : vector<2x32xf32> to vector<2x32xbf16>
    %c0_51 = arith.constant 0 : index
    %c0_52 = arith.constant 0 : index
    %170 = vector.load %arg10[%c0_51, %c0_52] : memref<2x64xbf16, #tpu.memory_space<vmem>>, vector<2x32xbf16>
    tpu.vector_store %arg10[%c0_51, %c0_52], %169 {strides = array<i32>} : memref<2x64xbf16, #tpu.memory_space<vmem>>, vector<2x32xbf16>,
    %171 = arith.truncf %137 : vector<2x32xf32> to vector<2x32xbf16>
    %c0_53 = arith.constant 0 : index
    %c32_54 = arith.constant 32 : index
    %172 = vector.load %arg10[%c0_53, %c32_54] : memref<2x64xbf16, #tpu.memory_space<vmem>>, vector<2x32xbf16>
    tpu.vector_store %arg10[%c0_53, %c32_54], %171 {strides = array<i32>} : memref<2x64xbf16, #tpu.memory_space<vmem>>, vector<2x32xbf16>,
    %c0_55 = arith.constant 0 : index
    %c0_56 = arith.constant 0 : index
    %173 = vector.load %arg10[%c0_55, %c0_56] : memref<2x64xbf16, #tpu.memory_space<vmem>>, vector<2x64xbf16>
    %cst_57 = arith.constant dense<0.000000e+00> : vector<2x128xf32>
    %174 = tpu.matmul %173, %4, %cst_57 {dimension_numbers = #tpu.dot_dimension_numbers<[1], [0], [0], [1], [0, 0, 1, 1], [], []>} : vector<2x64xbf16>, vector<64x128xbf16>, vector<2x128xf32> -> vector<2x128xf32>
    %175 = vector.broadcast %5 : vector<1x128xf32> to vector<2x128xf32>
    %176 = arith.addf %174, %175 : vector<2x128xf32>
    %177 = vector.extract_strided_slice %176 {offsets = [0, 0], sizes = [2, 32], strides = [1, 1]} : vector<2x128xf32> to vector<2x32xf32>
    %178 = arith.negf %177 : vector<2x32xf32>
    %179 = math.exp %178 : vector<2x32xf32>
    %cst_58 = arith.constant 1.000000e+00 : f32
    %180 = vector.broadcast %cst_58 : f32 to vector<2x32xf32>
    %181 = arith.addf %180, %179 : vector<2x32xf32>
    %182 = arith.divf %180, %181 : vector<2x32xf32>
    %183 = vector.extract_strided_slice %176 {offsets = [0, 32], sizes = [2, 32], strides = [1, 1]} : vector<2x128xf32> to vector<2x32xf32>
    %184 = arith.negf %183 : vector<2x32xf32>
    %185 = math.exp %184 : vector<2x32xf32>
    %cst_59 = arith.constant 1.000000e+00 : f32
    %186 = vector.broadcast %cst_59 : f32 to vector<2x32xf32>
    %187 = arith.addf %186, %185 : vector<2x32xf32>
    %188 = arith.divf %186, %187 : vector<2x32xf32>
    %189 = vector.extract_strided_slice %176 {offsets = [0, 64], sizes = [2, 32], strides = [1, 1]} : vector<2x128xf32> to vector<2x32xf32>
    %190 = math.tanh %189 : vector<2x32xf32>
    %191 = vector.extract_strided_slice %176 {offsets = [0, 96], sizes = [2, 32], strides = [1, 1]} : vector<2x128xf32> to vector<2x32xf32>
    %192 = arith.negf %191 : vector<2x32xf32>
    %193 = math.exp %192 : vector<2x32xf32>
    %cst_60 = arith.constant 1.000000e+00 : f32
    %194 = vector.broadcast %cst_60 : f32 to vector<2x32xf32>
    %195 = arith.addf %194, %193 : vector<2x32xf32>
    %196 = arith.divf %194, %195 : vector<2x32xf32>
    %197 = arith.mulf %188, %135 : vector<2x32xf32>
    %198 = arith.mulf %182, %190 : vector<2x32xf32>
    %199 = arith.addf %197, %198 : vector<2x32xf32>
    %200 = math.tanh %199 : vector<2x32xf32>
    %201 = arith.mulf %196, %200 : vector<2x32xf32>
    %c3_i32 = arith.constant 3 : i32
    %202 = arith.index_cast %c3_i32 : i32 to index
    %c0_61 = arith.constant 0 : index
    %c0_62 = arith.constant 0 : index
    %203 = vector.load %arg1[%202, %c0_61, %c0_62] : memref<8x2x128xf32, #tpu.memory_space<vmem>>, vector<1x2x128xf32>
    %204 = vector.shape_cast %203 : vector<1x2x128xf32> to vector<2x128xf32>
    %205 = arith.truncf %168 : vector<2x32xf32> to vector<2x32xbf16>
    %cst_63 = arith.constant dense<0.000000e+00> : vector<2x128xf32>
    %206 = tpu.matmul %205, %3, %cst_63 {dimension_numbers = #tpu.dot_dimension_numbers<[1], [0], [0], [1], [0, 0, 1, 1], [], []>} : vector<2x32xbf16>, vector<32x128xbf16>, vector<2x128xf32> -> vector<2x128xf32>
    %207 = arith.addf %204, %206 : vector<2x128xf32>
    %208 = vector.extract_strided_slice %207 {offsets = [0, 0], sizes = [2, 32], strides = [1, 1]} : vector<2x128xf32> to vector<2x32xf32>
    %209 = arith.negf %208 : vector<2x32xf32>
    %210 = math.exp %209 : vector<2x32xf32>
    %cst_64 = arith.constant 1.000000e+00 : f32
    %211 = vector.broadcast %cst_64 : f32 to vector<2x32xf32>
    %212 = arith.addf %211, %210 : vector<2x32xf32>
    %213 = arith.divf %211, %212 : vector<2x32xf32>
    %214 = vector.extract_strided_slice %207 {offsets = [0, 32], sizes = [2, 32], strides = [1, 1]} : vector<2x128xf32> to vector<2x32xf32>
    %215 = arith.negf %214 : vector<2x32xf32>
    %216 = math.exp %215 : vector<2x32xf32>
    %cst_65 = arith.constant 1.000000e+00 : f32
    %217 = vector.broadcast %cst_65 : f32 to vector<2x32xf32>
    %218 = arith.addf %217, %216 : vector<2x32xf32>
    %219 = arith.divf %217, %218 : vector<2x32xf32>
    %220 = vector.extract_strided_slice %207 {offsets = [0, 64], sizes = [2, 32], strides = [1, 1]} : vector<2x128xf32> to vector<2x32xf32>
    %221 = math.tanh %220 : vector<2x32xf32>
    %222 = vector.extract_strided_slice %207 {offsets = [0, 96], sizes = [2, 32], strides = [1, 1]} : vector<2x128xf32> to vector<2x32xf32>
    %223 = arith.negf %222 : vector<2x32xf32>
    %224 = math.exp %223 : vector<2x32xf32>
    %cst_66 = arith.constant 1.000000e+00 : f32
    %225 = vector.broadcast %cst_66 : f32 to vector<2x32xf32>
    %226 = arith.addf %225, %224 : vector<2x32xf32>
    %227 = arith.divf %225, %226 : vector<2x32xf32>
    %228 = arith.mulf %219, %166 : vector<2x32xf32>
    %229 = arith.mulf %213, %221 : vector<2x32xf32>
    %230 = arith.addf %228, %229 : vector<2x32xf32>
    %231 = math.tanh %230 : vector<2x32xf32>
    %232 = arith.mulf %227, %231 : vector<2x32xf32>
    %233 = arith.truncf %232 : vector<2x32xf32> to vector<2x32xbf16>
    %c0_67 = arith.constant 0 : index
    %c0_68 = arith.constant 0 : index
    %234 = vector.load %arg10[%c0_67, %c0_68] : memref<2x64xbf16, #tpu.memory_space<vmem>>, vector<2x32xbf16>
    tpu.vector_store %arg10[%c0_67, %c0_68], %233 {strides = array<i32>} : memref<2x64xbf16, #tpu.memory_space<vmem>>, vector<2x32xbf16>,
    %235 = arith.truncf %201 : vector<2x32xf32> to vector<2x32xbf16>
    %c0_69 = arith.constant 0 : index
    %c32_70 = arith.constant 32 : index
    %236 = vector.load %arg10[%c0_69, %c32_70] : memref<2x64xbf16, #tpu.memory_space<vmem>>, vector<2x32xbf16>
    tpu.vector_store %arg10[%c0_69, %c32_70], %235 {strides = array<i32>} : memref<2x64xbf16, #tpu.memory_space<vmem>>, vector<2x32xbf16>,
    %c0_71 = arith.constant 0 : index
    %c0_72 = arith.constant 0 : index
    %237 = vector.load %arg10[%c0_71, %c0_72] : memref<2x64xbf16, #tpu.memory_space<vmem>>, vector<2x64xbf16>
    %cst_73 = arith.constant dense<0.000000e+00> : vector<2x128xf32>
    %238 = tpu.matmul %237, %4, %cst_73 {dimension_numbers = #tpu.dot_dimension_numbers<[1], [0], [0], [1], [0, 0, 1, 1], [], []>} : vector<2x64xbf16>, vector<64x128xbf16>, vector<2x128xf32> -> vector<2x128xf32>
    %239 = vector.broadcast %5 : vector<1x128xf32> to vector<2x128xf32>
    %240 = arith.addf %238, %239 : vector<2x128xf32>
    %241 = vector.extract_strided_slice %240 {offsets = [0, 0], sizes = [2, 32], strides = [1, 1]} : vector<2x128xf32> to vector<2x32xf32>
    %242 = arith.negf %241 : vector<2x32xf32>
    %243 = math.exp %242 : vector<2x32xf32>
    %cst_74 = arith.constant 1.000000e+00 : f32
    %244 = vector.broadcast %cst_74 : f32 to vector<2x32xf32>
    %245 = arith.addf %244, %243 : vector<2x32xf32>
    %246 = arith.divf %244, %245 : vector<2x32xf32>
    %247 = vector.extract_strided_slice %240 {offsets = [0, 32], sizes = [2, 32], strides = [1, 1]} : vector<2x128xf32> to vector<2x32xf32>
    %248 = arith.negf %247 : vector<2x32xf32>
    %249 = math.exp %248 : vector<2x32xf32>
    %cst_75 = arith.constant 1.000000e+00 : f32
    %250 = vector.broadcast %cst_75 : f32 to vector<2x32xf32>
    %251 = arith.addf %250, %249 : vector<2x32xf32>
    %252 = arith.divf %250, %251 : vector<2x32xf32>
    %253 = vector.extract_strided_slice %240 {offsets = [0, 64], sizes = [2, 32], strides = [1, 1]} : vector<2x128xf32> to vector<2x32xf32>
    %254 = math.tanh %253 : vector<2x32xf32>
    %255 = vector.extract_strided_slice %240 {offsets = [0, 96], sizes = [2, 32], strides = [1, 1]} : vector<2x128xf32> to vector<2x32xf32>
    %256 = arith.negf %255 : vector<2x32xf32>
    %257 = math.exp %256 : vector<2x32xf32>
    %cst_76 = arith.constant 1.000000e+00 : f32
    %258 = vector.broadcast %cst_76 : f32 to vector<2x32xf32>
    %259 = arith.addf %258, %257 : vector<2x32xf32>
    %260 = arith.divf %258, %259 : vector<2x32xf32>
    %261 = arith.mulf %252, %199 : vector<2x32xf32>
    %262 = arith.mulf %246, %254 : vector<2x32xf32>
    %263 = arith.addf %261, %262 : vector<2x32xf32>
    %264 = math.tanh %263 : vector<2x32xf32>
    %265 = arith.mulf %260, %264 : vector<2x32xf32>
    %c4_i32 = arith.constant 4 : i32
    %266 = arith.index_cast %c4_i32 : i32 to index
    %c0_77 = arith.constant 0 : index
    %c0_78 = arith.constant 0 : index
    %267 = vector.load %arg1[%266, %c0_77, %c0_78] : memref<8x2x128xf32, #tpu.memory_space<vmem>>, vector<1x2x128xf32>
    %268 = vector.shape_cast %267 : vector<1x2x128xf32> to vector<2x128xf32>
    %269 = arith.truncf %232 : vector<2x32xf32> to vector<2x32xbf16>
    %cst_79 = arith.constant dense<0.000000e+00> : vector<2x128xf32>
    %270 = tpu.matmul %269, %3, %cst_79 {dimension_numbers = #tpu.dot_dimension_numbers<[1], [0], [0], [1], [0, 0, 1, 1], [], []>} : vector<2x32xbf16>, vector<32x128xbf16>, vector<2x128xf32> -> vector<2x128xf32>
    %271 = arith.addf %268, %270 : vector<2x128xf32>
    %272 = vector.extract_strided_slice %271 {offsets = [0, 0], sizes = [2, 32], strides = [1, 1]} : vector<2x128xf32> to vector<2x32xf32>
    %273 = arith.negf %272 : vector<2x32xf32>
    %274 = math.exp %273 : vector<2x32xf32>
    %cst_80 = arith.constant 1.000000e+00 : f32
    %275 = vector.broadcast %cst_80 : f32 to vector<2x32xf32>
    %276 = arith.addf %275, %274 : vector<2x32xf32>
    %277 = arith.divf %275, %276 : vector<2x32xf32>
    %278 = vector.extract_strided_slice %271 {offsets = [0, 32], sizes = [2, 32], strides = [1, 1]} : vector<2x128xf32> to vector<2x32xf32>
    %279 = arith.negf %278 : vector<2x32xf32>
    %280 = math.exp %279 : vector<2x32xf32>
    %cst_81 = arith.constant 1.000000e+00 : f32
    %281 = vector.broadcast %cst_81 : f32 to vector<2x32xf32>
    %282 = arith.addf %281, %280 : vector<2x32xf32>
    %283 = arith.divf %281, %282 : vector<2x32xf32>
    %284 = vector.extract_strided_slice %271 {offsets = [0, 64], sizes = [2, 32], strides = [1, 1]} : vector<2x128xf32> to vector<2x32xf32>
    %285 = math.tanh %284 : vector<2x32xf32>
    %286 = vector.extract_strided_slice %271 {offsets = [0, 96], sizes = [2, 32], strides = [1, 1]} : vector<2x128xf32> to vector<2x32xf32>
    %287 = arith.negf %286 : vector<2x32xf32>
    %288 = math.exp %287 : vector<2x32xf32>
    %cst_82 = arith.constant 1.000000e+00 : f32
    %289 = vector.broadcast %cst_82 : f32 to vector<2x32xf32>
    %290 = arith.addf %289, %288 : vector<2x32xf32>
    %291 = arith.divf %289, %290 : vector<2x32xf32>
    %292 = arith.mulf %283, %230 : vector<2x32xf32>
    %293 = arith.mulf %277, %285 : vector<2x32xf32>
    %294 = arith.addf %292, %293 : vector<2x32xf32>
    %295 = math.tanh %294 : vector<2x32xf32>
    %296 = arith.mulf %291, %295 : vector<2x32xf32>
    %297 = arith.truncf %296 : vector<2x32xf32> to vector<2x32xbf16>
    %c0_83 = arith.constant 0 : index
    %c0_84 = arith.constant 0 : index
    %298 = vector.load %arg10[%c0_83, %c0_84] : memref<2x64xbf16, #tpu.memory_space<vmem>>, vector<2x32xbf16>
    tpu.vector_store %arg10[%c0_83, %c0_84], %297 {strides = array<i32>} : memref<2x64xbf16, #tpu.memory_space<vmem>>, vector<2x32xbf16>,
    %299 = arith.truncf %265 : vector<2x32xf32> to vector<2x32xbf16>
    %c0_85 = arith.constant 0 : index
    %c32_86 = arith.constant 32 : index
    %300 = vector.load %arg10[%c0_85, %c32_86] : memref<2x64xbf16, #tpu.memory_space<vmem>>, vector<2x32xbf16>
    tpu.vector_store %arg10[%c0_85, %c32_86], %299 {strides = array<i32>} : memref<2x64xbf16, #tpu.memory_space<vmem>>, vector<2x32xbf16>,
    %c0_87 = arith.constant 0 : index
    %c0_88 = arith.constant 0 : index
    %301 = vector.load %arg10[%c0_87, %c0_88] : memref<2x64xbf16, #tpu.memory_space<vmem>>, vector<2x64xbf16>
    %cst_89 = arith.constant dense<0.000000e+00> : vector<2x128xf32>
    %302 = tpu.matmul %301, %4, %cst_89 {dimension_numbers = #tpu.dot_dimension_numbers<[1], [0], [0], [1], [0, 0, 1, 1], [], []>} : vector<2x64xbf16>, vector<64x128xbf16>, vector<2x128xf32> -> vector<2x128xf32>
    %303 = vector.broadcast %5 : vector<1x128xf32> to vector<2x128xf32>
    %304 = arith.addf %302, %303 : vector<2x128xf32>
    %305 = vector.extract_strided_slice %304 {offsets = [0, 0], sizes = [2, 32], strides = [1, 1]} : vector<2x128xf32> to vector<2x32xf32>
    %306 = arith.negf %305 : vector<2x32xf32>
    %307 = math.exp %306 : vector<2x32xf32>
    %cst_90 = arith.constant 1.000000e+00 : f32
    %308 = vector.broadcast %cst_90 : f32 to vector<2x32xf32>
    %309 = arith.addf %308, %307 : vector<2x32xf32>
    %310 = arith.divf %308, %309 : vector<2x32xf32>
    %311 = vector.extract_strided_slice %304 {offsets = [0, 32], sizes = [2, 32], strides = [1, 1]} : vector<2x128xf32> to vector<2x32xf32>
    %312 = arith.negf %311 : vector<2x32xf32>
    %313 = math.exp %312 : vector<2x32xf32>
    %cst_91 = arith.constant 1.000000e+00 : f32
    %314 = vector.broadcast %cst_91 : f32 to vector<2x32xf32>
    %315 = arith.addf %314, %313 : vector<2x32xf32>
    %316 = arith.divf %314, %315 : vector<2x32xf32>
    %317 = vector.extract_strided_slice %304 {offsets = [0, 64], sizes = [2, 32], strides = [1, 1]} : vector<2x128xf32> to vector<2x32xf32>
    %318 = math.tanh %317 : vector<2x32xf32>
    %319 = vector.extract_strided_slice %304 {offsets = [0, 96], sizes = [2, 32], strides = [1, 1]} : vector<2x128xf32> to vector<2x32xf32>
    %320 = arith.negf %319 : vector<2x32xf32>
    %321 = math.exp %320 : vector<2x32xf32>
    %cst_92 = arith.constant 1.000000e+00 : f32
    %322 = vector.broadcast %cst_92 : f32 to vector<2x32xf32>
    %323 = arith.addf %322, %321 : vector<2x32xf32>
    %324 = arith.divf %322, %323 : vector<2x32xf32>
    %325 = arith.mulf %316, %263 : vector<2x32xf32>
    %326 = arith.mulf %310, %318 : vector<2x32xf32>
    %327 = arith.addf %325, %326 : vector<2x32xf32>
    %328 = math.tanh %327 : vector<2x32xf32>
    %329 = arith.mulf %324, %328 : vector<2x32xf32>
    %c5_i32 = arith.constant 5 : i32
    %330 = arith.index_cast %c5_i32 : i32 to index
    %c0_93 = arith.constant 0 : index
    %c0_94 = arith.constant 0 : index
    %331 = vector.load %arg1[%330, %c0_93, %c0_94] : memref<8x2x128xf32, #tpu.memory_space<vmem>>, vector<1x2x128xf32>
    %332 = vector.shape_cast %331 : vector<1x2x128xf32> to vector<2x128xf32>
    %333 = arith.truncf %296 : vector<2x32xf32> to vector<2x32xbf16>
    %cst_95 = arith.constant dense<0.000000e+00> : vector<2x128xf32>
    %334 = tpu.matmul %333, %3, %cst_95 {dimension_numbers = #tpu.dot_dimension_numbers<[1], [0], [0], [1], [0, 0, 1, 1], [], []>} : vector<2x32xbf16>, vector<32x128xbf16>, vector<2x128xf32> -> vector<2x128xf32>
    %335 = arith.addf %332, %334 : vector<2x128xf32>
    %336 = vector.extract_strided_slice %335 {offsets = [0, 0], sizes = [2, 32], strides = [1, 1]} : vector<2x128xf32> to vector<2x32xf32>
    %337 = arith.negf %336 : vector<2x32xf32>
    %338 = math.exp %337 : vector<2x32xf32>
    %cst_96 = arith.constant 1.000000e+00 : f32
    %339 = vector.broadcast %cst_96 : f32 to vector<2x32xf32>
    %340 = arith.addf %339, %338 : vector<2x32xf32>
    %341 = arith.divf %339, %340 : vector<2x32xf32>
    %342 = vector.extract_strided_slice %335 {offsets = [0, 32], sizes = [2, 32], strides = [1, 1]} : vector<2x128xf32> to vector<2x32xf32>
    %343 = arith.negf %342 : vector<2x32xf32>
    %344 = math.exp %343 : vector<2x32xf32>
    %cst_97 = arith.constant 1.000000e+00 : f32
    %345 = vector.broadcast %cst_97 : f32 to vector<2x32xf32>
    %346 = arith.addf %345, %344 : vector<2x32xf32>
    %347 = arith.divf %345, %346 : vector<2x32xf32>
    %348 = vector.extract_strided_slice %335 {offsets = [0, 64], sizes = [2, 32], strides = [1, 1]} : vector<2x128xf32> to vector<2x32xf32>
    %349 = math.tanh %348 : vector<2x32xf32>
    %350 = vector.extract_strided_slice %335 {offsets = [0, 96], sizes = [2, 32], strides = [1, 1]} : vector<2x128xf32> to vector<2x32xf32>
    %351 = arith.negf %350 : vector<2x32xf32>
    %352 = math.exp %351 : vector<2x32xf32>
    %cst_98 = arith.constant 1.000000e+00 : f32
    %353 = vector.broadcast %cst_98 : f32 to vector<2x32xf32>
    %354 = arith.addf %353, %352 : vector<2x32xf32>
    %355 = arith.divf %353, %354 : vector<2x32xf32>
    %356 = arith.mulf %347, %294 : vector<2x32xf32>
    %357 = arith.mulf %341, %349 : vector<2x32xf32>
    %358 = arith.addf %356, %357 : vector<2x32xf32>
    %359 = math.tanh %358 : vector<2x32xf32>
    %360 = arith.mulf %355, %359 : vector<2x32xf32>
    %361 = arith.truncf %360 : vector<2x32xf32> to vector<2x32xbf16>
    %c0_99 = arith.constant 0 : index
    %c0_100 = arith.constant 0 : index
    %362 = vector.load %arg10[%c0_99, %c0_100] : memref<2x64xbf16, #tpu.memory_space<vmem>>, vector<2x32xbf16>
    tpu.vector_store %arg10[%c0_99, %c0_100], %361 {strides = array<i32>} : memref<2x64xbf16, #tpu.memory_space<vmem>>, vector<2x32xbf16>,
    %363 = arith.truncf %329 : vector<2x32xf32> to vector<2x32xbf16>
    %c0_101 = arith.constant 0 : index
    %c32_102 = arith.constant 32 : index
    %364 = vector.load %arg10[%c0_101, %c32_102] : memref<2x64xbf16, #tpu.memory_space<vmem>>, vector<2x32xbf16>
    tpu.vector_store %arg10[%c0_101, %c32_102], %363 {strides = array<i32>} : memref<2x64xbf16, #tpu.memory_space<vmem>>, vector<2x32xbf16>,
    %c0_103 = arith.constant 0 : index
    %c0_104 = arith.constant 0 : index
    %365 = vector.load %arg10[%c0_103, %c0_104] : memref<2x64xbf16, #tpu.memory_space<vmem>>, vector<2x64xbf16>
    %cst_105 = arith.constant dense<0.000000e+00> : vector<2x128xf32>
    %366 = tpu.matmul %365, %4, %cst_105 {dimension_numbers = #tpu.dot_dimension_numbers<[1], [0], [0], [1], [0, 0, 1, 1], [], []>} : vector<2x64xbf16>, vector<64x128xbf16>, vector<2x128xf32> -> vector<2x128xf32>
    %367 = vector.broadcast %5 : vector<1x128xf32> to vector<2x128xf32>
    %368 = arith.addf %366, %367 : vector<2x128xf32>
    %369 = vector.extract_strided_slice %368 {offsets = [0, 0], sizes = [2, 32], strides = [1, 1]} : vector<2x128xf32> to vector<2x32xf32>
    %370 = arith.negf %369 : vector<2x32xf32>
    %371 = math.exp %370 : vector<2x32xf32>
    %cst_106 = arith.constant 1.000000e+00 : f32
    %372 = vector.broadcast %cst_106 : f32 to vector<2x32xf32>
    %373 = arith.addf %372, %371 : vector<2x32xf32>
    %374 = arith.divf %372, %373 : vector<2x32xf32>
    %375 = vector.extract_strided_slice %368 {offsets = [0, 32], sizes = [2, 32], strides = [1, 1]} : vector<2x128xf32> to vector<2x32xf32>
    %376 = arith.negf %375 : vector<2x32xf32>
    %377 = math.exp %376 : vector<2x32xf32>
    %cst_107 = arith.constant 1.000000e+00 : f32
    %378 = vector.broadcast %cst_107 : f32 to vector<2x32xf32>
    %379 = arith.addf %378, %377 : vector<2x32xf32>
    %380 = arith.divf %378, %379 : vector<2x32xf32>
    %381 = vector.extract_strided_slice %368 {offsets = [0, 64], sizes = [2, 32], strides = [1, 1]} : vector<2x128xf32> to vector<2x32xf32>
    %382 = math.tanh %381 : vector<2x32xf32>
    %383 = vector.extract_strided_slice %368 {offsets = [0, 96], sizes = [2, 32], strides = [1, 1]} : vector<2x128xf32> to vector<2x32xf32>
    %384 = arith.negf %383 : vector<2x32xf32>
    %385 = math.exp %384 : vector<2x32xf32>
    %cst_108 = arith.constant 1.000000e+00 : f32
    %386 = vector.broadcast %cst_108 : f32 to vector<2x32xf32>
    %387 = arith.addf %386, %385 : vector<2x32xf32>
    %388 = arith.divf %386, %387 : vector<2x32xf32>
    %389 = arith.mulf %380, %327 : vector<2x32xf32>
    %390 = arith.mulf %374, %382 : vector<2x32xf32>
    %391 = arith.addf %389, %390 : vector<2x32xf32>
    %392 = math.tanh %391 : vector<2x32xf32>
    %393 = arith.mulf %388, %392 : vector<2x32xf32>
    %c6_i32 = arith.constant 6 : i32
    %394 = arith.index_cast %c6_i32 : i32 to index
    %c0_109 = arith.constant 0 : index
    %c0_110 = arith.constant 0 : index
    %395 = vector.load %arg1[%394, %c0_109, %c0_110] : memref<8x2x128xf32, #tpu.memory_space<vmem>>, vector<1x2x128xf32>
    %396 = vector.shape_cast %395 : vector<1x2x128xf32> to vector<2x128xf32>
    %397 = arith.truncf %360 : vector<2x32xf32> to vector<2x32xbf16>
    %cst_111 = arith.constant dense<0.000000e+00> : vector<2x128xf32>
    %398 = tpu.matmul %397, %3, %cst_111 {dimension_numbers = #tpu.dot_dimension_numbers<[1], [0], [0], [1], [0, 0, 1, 1], [], []>} : vector<2x32xbf16>, vector<32x128xbf16>, vector<2x128xf32> -> vector<2x128xf32>
    %399 = arith.addf %396, %398 : vector<2x128xf32>
    %400 = vector.extract_strided_slice %399 {offsets = [0, 0], sizes = [2, 32], strides = [1, 1]} : vector<2x128xf32> to vector<2x32xf32>
    %401 = arith.negf %400 : vector<2x32xf32>
    %402 = math.exp %401 : vector<2x32xf32>
    %cst_112 = arith.constant 1.000000e+00 : f32
    %403 = vector.broadcast %cst_112 : f32 to vector<2x32xf32>
    %404 = arith.addf %403, %402 : vector<2x32xf32>
    %405 = arith.divf %403, %404 : vector<2x32xf32>
    %406 = vector.extract_strided_slice %399 {offsets = [0, 32], sizes = [2, 32], strides = [1, 1]} : vector<2x128xf32> to vector<2x32xf32>
    %407 = arith.negf %406 : vector<2x32xf32>
    %408 = math.exp %407 : vector<2x32xf32>
    %cst_113 = arith.constant 1.000000e+00 : f32
    %409 = vector.broadcast %cst_113 : f32 to vector<2x32xf32>
    %410 = arith.addf %409, %408 : vector<2x32xf32>
    %411 = arith.divf %409, %410 : vector<2x32xf32>
    %412 = vector.extract_strided_slice %399 {offsets = [0, 64], sizes = [2, 32], strides = [1, 1]} : vector<2x128xf32> to vector<2x32xf32>
    %413 = math.tanh %412 : vector<2x32xf32>
    %414 = vector.extract_strided_slice %399 {offsets = [0, 96], sizes = [2, 32], strides = [1, 1]} : vector<2x128xf32> to vector<2x32xf32>
    %415 = arith.negf %414 : vector<2x32xf32>
    %416 = math.exp %415 : vector<2x32xf32>
    %cst_114 = arith.constant 1.000000e+00 : f32
    %417 = vector.broadcast %cst_114 : f32 to vector<2x32xf32>
    %418 = arith.addf %417, %416 : vector<2x32xf32>
    %419 = arith.divf %417, %418 : vector<2x32xf32>
    %420 = arith.mulf %411, %358 : vector<2x32xf32>
    %421 = arith.mulf %405, %413 : vector<2x32xf32>
    %422 = arith.addf %420, %421 : vector<2x32xf32>
    %423 = math.tanh %422 : vector<2x32xf32>
    %424 = arith.mulf %419, %423 : vector<2x32xf32>
    %425 = arith.truncf %424 : vector<2x32xf32> to vector<2x32xbf16>
    %c0_115 = arith.constant 0 : index
    %c0_116 = arith.constant 0 : index
    %426 = vector.load %arg10[%c0_115, %c0_116] : memref<2x64xbf16, #tpu.memory_space<vmem>>, vector<2x32xbf16>
    tpu.vector_store %arg10[%c0_115, %c0_116], %425 {strides = array<i32>} : memref<2x64xbf16, #tpu.memory_space<vmem>>, vector<2x32xbf16>,
    %427 = arith.truncf %393 : vector<2x32xf32> to vector<2x32xbf16>
    %c0_117 = arith.constant 0 : index
    %c32_118 = arith.constant 32 : index
    %428 = vector.load %arg10[%c0_117, %c32_118] : memref<2x64xbf16, #tpu.memory_space<vmem>>, vector<2x32xbf16>
    tpu.vector_store %arg10[%c0_117, %c32_118], %427 {strides = array<i32>} : memref<2x64xbf16, #tpu.memory_space<vmem>>, vector<2x32xbf16>,
    %c0_119 = arith.constant 0 : index
    %c0_120 = arith.constant 0 : index
    %429 = vector.load %arg10[%c0_119, %c0_120] : memref<2x64xbf16, #tpu.memory_space<vmem>>, vector<2x64xbf16>
    %cst_121 = arith.constant dense<0.000000e+00> : vector<2x128xf32>
    %430 = tpu.matmul %429, %4, %cst_121 {dimension_numbers = #tpu.dot_dimension_numbers<[1], [0], [0], [1], [0, 0, 1, 1], [], []>} : vector<2x64xbf16>, vector<64x128xbf16>, vector<2x128xf32> -> vector<2x128xf32>
    %431 = vector.broadcast %5 : vector<1x128xf32> to vector<2x128xf32>
    %432 = arith.addf %430, %431 : vector<2x128xf32>
    %433 = vector.extract_strided_slice %432 {offsets = [0, 0], sizes = [2, 32], strides = [1, 1]} : vector<2x128xf32> to vector<2x32xf32>
    %434 = arith.negf %433 : vector<2x32xf32>
    %435 = math.exp %434 : vector<2x32xf32>
    %cst_122 = arith.constant 1.000000e+00 : f32
    %436 = vector.broadcast %cst_122 : f32 to vector<2x32xf32>
    %437 = arith.addf %436, %435 : vector<2x32xf32>
    %438 = arith.divf %436, %437 : vector<2x32xf32>
    %439 = vector.extract_strided_slice %432 {offsets = [0, 32], sizes = [2, 32], strides = [1, 1]} : vector<2x128xf32> to vector<2x32xf32>
    %440 = arith.negf %439 : vector<2x32xf32>
    %441 = math.exp %440 : vector<2x32xf32>
    %cst_123 = arith.constant 1.000000e+00 : f32
    %442 = vector.broadcast %cst_123 : f32 to vector<2x32xf32>
    %443 = arith.addf %442, %441 : vector<2x32xf32>
    %444 = arith.divf %442, %443 : vector<2x32xf32>
    %445 = vector.extract_strided_slice %432 {offsets = [0, 64], sizes = [2, 32], strides = [1, 1]} : vector<2x128xf32> to vector<2x32xf32>
    %446 = math.tanh %445 : vector<2x32xf32>
    %447 = vector.extract_strided_slice %432 {offsets = [0, 96], sizes = [2, 32], strides = [1, 1]} : vector<2x128xf32> to vector<2x32xf32>
    %448 = arith.negf %447 : vector<2x32xf32>
    %449 = math.exp %448 : vector<2x32xf32>
    %cst_124 = arith.constant 1.000000e+00 : f32
    %450 = vector.broadcast %cst_124 : f32 to vector<2x32xf32>
    %451 = arith.addf %450, %449 : vector<2x32xf32>
    %452 = arith.divf %450, %451 : vector<2x32xf32>
    %453 = arith.mulf %444, %391 : vector<2x32xf32>
    %454 = arith.mulf %438, %446 : vector<2x32xf32>
    %455 = arith.addf %453, %454 : vector<2x32xf32>
    %456 = math.tanh %455 : vector<2x32xf32>
    %457 = arith.mulf %452, %456 : vector<2x32xf32>
    %c7_i32 = arith.constant 7 : i32
    %458 = arith.index_cast %c7_i32 : i32 to index
    %c0_125 = arith.constant 0 : index
    %c0_126 = arith.constant 0 : index
    %459 = vector.load %arg1[%458, %c0_125, %c0_126] : memref<8x2x128xf32, #tpu.memory_space<vmem>>, vector<1x2x128xf32>
    %460 = vector.shape_cast %459 : vector<1x2x128xf32> to vector<2x128xf32>
    %461 = arith.truncf %424 : vector<2x32xf32> to vector<2x32xbf16>
    %cst_127 = arith.constant dense<0.000000e+00> : vector<2x128xf32>
    %462 = tpu.matmul %461, %3, %cst_127 {dimension_numbers = #tpu.dot_dimension_numbers<[1], [0], [0], [1], [0, 0, 1, 1], [], []>} : vector<2x32xbf16>, vector<32x128xbf16>, vector<2x128xf32> -> vector<2x128xf32>
    %463 = arith.addf %460, %462 : vector<2x128xf32>
    %464 = vector.extract_strided_slice %463 {offsets = [0, 0], sizes = [2, 32], strides = [1, 1]} : vector<2x128xf32> to vector<2x32xf32>
    %465 = arith.negf %464 : vector<2x32xf32>
    %466 = math.exp %465 : vector<2x32xf32>
    %cst_128 = arith.constant 1.000000e+00 : f32
    %467 = vector.broadcast %cst_128 : f32 to vector<2x32xf32>
    %468 = arith.addf %467, %466 : vector<2x32xf32>
    %469 = arith.divf %467, %468 : vector<2x32xf32>
    %470 = vector.extract_strided_slice %463 {offsets = [0, 32], sizes = [2, 32], strides = [1, 1]} : vector<2x128xf32> to vector<2x32xf32>
    %471 = arith.negf %470 : vector<2x32xf32>
    %472 = math.exp %471 : vector<2x32xf32>
    %cst_129 = arith.constant 1.000000e+00 : f32
    %473 = vector.broadcast %cst_129 : f32 to vector<2x32xf32>
    %474 = arith.addf %473, %472 : vector<2x32xf32>
    %475 = arith.divf %473, %474 : vector<2x32xf32>
    %476 = vector.extract_strided_slice %463 {offsets = [0, 64], sizes = [2, 32], strides = [1, 1]} : vector<2x128xf32> to vector<2x32xf32>
    %477 = math.tanh %476 : vector<2x32xf32>
    %478 = vector.extract_strided_slice %463 {offsets = [0, 96], sizes = [2, 32], strides = [1, 1]} : vector<2x128xf32> to vector<2x32xf32>
    %479 = arith.negf %478 : vector<2x32xf32>
    %480 = math.exp %479 : vector<2x32xf32>
    %cst_130 = arith.constant 1.000000e+00 : f32
    %481 = vector.broadcast %cst_130 : f32 to vector<2x32xf32>
    %482 = arith.addf %481, %480 : vector<2x32xf32>
    %483 = arith.divf %481, %482 : vector<2x32xf32>
    %484 = arith.mulf %475, %422 : vector<2x32xf32>
    %485 = arith.mulf %469, %477 : vector<2x32xf32>
    %486 = arith.addf %484, %485 : vector<2x32xf32>
    %487 = math.tanh %486 : vector<2x32xf32>
    %488 = arith.mulf %483, %487 : vector<2x32xf32>
    %489 = arith.truncf %488 : vector<2x32xf32> to vector<2x32xbf16>
    %c0_131 = arith.constant 0 : index
    %c0_132 = arith.constant 0 : index
    %490 = vector.load %arg10[%c0_131, %c0_132] : memref<2x64xbf16, #tpu.memory_space<vmem>>, vector<2x32xbf16>
    tpu.vector_store %arg10[%c0_131, %c0_132], %489 {strides = array<i32>} : memref<2x64xbf16, #tpu.memory_space<vmem>>, vector<2x32xbf16>,
    %491 = arith.truncf %457 : vector<2x32xf32> to vector<2x32xbf16>
    %c0_133 = arith.constant 0 : index
    %c32_134 = arith.constant 32 : index
    %492 = vector.load %arg10[%c0_133, %c32_134] : memref<2x64xbf16, #tpu.memory_space<vmem>>, vector<2x32xbf16>
    tpu.vector_store %arg10[%c0_133, %c32_134], %491 {strides = array<i32>} : memref<2x64xbf16, #tpu.memory_space<vmem>>, vector<2x32xbf16>,
    %c0_135 = arith.constant 0 : index
    %c0_136 = arith.constant 0 : index
    %493 = vector.load %arg10[%c0_135, %c0_136] : memref<2x64xbf16, #tpu.memory_space<vmem>>, vector<2x64xbf16>
    %cst_137 = arith.constant dense<0.000000e+00> : vector<2x128xf32>
    %494 = tpu.matmul %493, %4, %cst_137 {dimension_numbers = #tpu.dot_dimension_numbers<[1], [0], [0], [1], [0, 0, 1, 1], [], []>} : vector<2x64xbf16>, vector<64x128xbf16>, vector<2x128xf32> -> vector<2x128xf32>
    %495 = vector.broadcast %5 : vector<1x128xf32> to vector<2x128xf32>
    %496 = arith.addf %494, %495 : vector<2x128xf32>
    %497 = vector.extract_strided_slice %496 {offsets = [0, 0], sizes = [2, 32], strides = [1, 1]} : vector<2x128xf32> to vector<2x32xf32>
    %498 = arith.negf %497 : vector<2x32xf32>
    %499 = math.exp %498 : vector<2x32xf32>
    %cst_138 = arith.constant 1.000000e+00 : f32
    %500 = vector.broadcast %cst_138 : f32 to vector<2x32xf32>
    %501 = arith.addf %500, %499 : vector<2x32xf32>
    %502 = arith.divf %500, %501 : vector<2x32xf32>
    %503 = vector.extract_strided_slice %496 {offsets = [0, 32], sizes = [2, 32], strides = [1, 1]} : vector<2x128xf32> to vector<2x32xf32>
    %504 = arith.negf %503 : vector<2x32xf32>
    %505 = math.exp %504 : vector<2x32xf32>
    %cst_139 = arith.constant 1.000000e+00 : f32
    %506 = vector.broadcast %cst_139 : f32 to vector<2x32xf32>
    %507 = arith.addf %506, %505 : vector<2x32xf32>
    %508 = arith.divf %506, %507 : vector<2x32xf32>
    %509 = vector.extract_strided_slice %496 {offsets = [0, 64], sizes = [2, 32], strides = [1, 1]} : vector<2x128xf32> to vector<2x32xf32>
    %510 = math.tanh %509 : vector<2x32xf32>
    %511 = vector.extract_strided_slice %496 {offsets = [0, 96], sizes = [2, 32], strides = [1, 1]} : vector<2x128xf32> to vector<2x32xf32>
    %512 = arith.negf %511 : vector<2x32xf32>
    %513 = math.exp %512 : vector<2x32xf32>
    %cst_140 = arith.constant 1.000000e+00 : f32
    %514 = vector.broadcast %cst_140 : f32 to vector<2x32xf32>
    %515 = arith.addf %514, %513 : vector<2x32xf32>
    %516 = arith.divf %514, %515 : vector<2x32xf32>
    %517 = arith.mulf %508, %455 : vector<2x32xf32>
    %518 = arith.mulf %502, %510 : vector<2x32xf32>
    %519 = arith.addf %517, %518 : vector<2x32xf32>
    %520 = math.tanh %519 : vector<2x32xf32>
    %521 = arith.mulf %516, %520 : vector<2x32xf32>
    %c8_i32 = arith.constant 8 : i32
    %c0_141 = arith.constant 0 : index
    %c0_142 = arith.constant 0 : index
    %522 = vector.load %arg6[%c0_141, %c0_142] : memref<2x32xf32, #tpu.memory_space<vmem>>, vector<2x32xf32>
    tpu.vector_store %arg6[%c0_141, %c0_142], %488 {strides = array<i32>} : memref<2x32xf32, #tpu.memory_space<vmem>>, vector<2x32xf32>,
    %c0_143 = arith.constant 0 : index
    %c0_144 = arith.constant 0 : index
    %523 = vector.load %arg7[%c0_143, %c0_144] : memref<2x32xf32, #tpu.memory_space<vmem>>, vector<2x32xf32>
    tpu.vector_store %arg7[%c0_143, %c0_144], %486 {strides = array<i32>} : memref<2x32xf32, #tpu.memory_space<vmem>>, vector<2x32xf32>,
    %c0_145 = arith.constant 0 : index
    %c0_146 = arith.constant 0 : index
    %524 = vector.load %arg8[%c0_145, %c0_146] : memref<2x32xf32, #tpu.memory_space<vmem>>, vector<2x32xf32>
    tpu.vector_store %arg8[%c0_145, %c0_146], %521 {strides = array<i32>} : memref<2x32xf32, #tpu.memory_space<vmem>>, vector<2x32xf32>,
    %c0_147 = arith.constant 0 : index
    %c0_148 = arith.constant 0 : index
    %525 = vector.load %arg9[%c0_147, %c0_148] : memref<2x32xf32, #tpu.memory_space<vmem>>, vector<2x32xf32>
    tpu.vector_store %arg9[%c0_147, %c0_148], %519 {strides = array<i32>} : memref<2x32xf32, #tpu.memory_space<vmem>>, vector<2x32xf32>,
    %c0_i32_149 = arith.constant 0 : i32
    %526 = arith.cmpi eq, %arg0, %c0_i32_149 : i32
    %527 = arith.extui %526 : i1 to i32
    %c0_i32_150 = arith.constant 0 : i32
    %528 = arith.cmpi ne, %527, %c0_i32_150 : i32
    scf.if %528 {
      %c0_151 = arith.constant 0 : index
      %c0_152 = arith.constant 0 : index
      %529 = vector.load %arg8[%c0_151, %c0_152] : memref<2x32xf32, #tpu.memory_space<vmem>>, vector<2x32xf32>
      %c0_153 = arith.constant 0 : index
      %c0_154 = arith.constant 0 : index
      %530 = vector.load %arg5[%c0_153, %c0_154] : memref<2x32xf32, #tpu.memory_space<vmem>>, vector<2x32xf32>
      tpu.vector_store %arg5[%c0_153, %c0_154], %529 {strides = array<i32>} : memref<2x32xf32, #tpu.memory_space<vmem>>, vector<2x32xf32>,
    } else {
    }
    return
  }
  func.func @transform_0(%arg0: i32) -> (i32, i32, i32) {
    %c0_i32 = arith.constant 0 : i32
    %c0_i32_0 = arith.constant 0 : i32
    %c0_i32_1 = arith.constant 0 : i32
    return %arg0, %c0_i32, %c0_i32_0 : i32, i32, i32
  }
  func.func @transform_1(%arg0: i32) -> (i32, i32) {
    %c0_i32 = arith.constant 0 : i32
    %c0_i32_0 = arith.constant 0 : i32
    %c0_i32_1 = arith.constant 0 : i32
    return %c0_i32, %c0_i32_0 : i32, i32
  }
  func.func @transform_2(%arg0: i32) -> (i32, i32) {
    %c0_i32 = arith.constant 0 : i32
    %c0_i32_0 = arith.constant 0 : i32
    %c0_i32_1 = arith.constant 0 : i32
    return %c0_i32, %c0_i32_0 : i32, i32
  }
  func.func @transform_3(%arg0: i32) -> (i32, i32) {
    %c0_i32 = arith.constant 0 : i32
    %c0_i32_0 = arith.constant 0 : i32
    %c0_i32_1 = arith.constant 0 : i32
    return %c0_i32, %c0_i32_0 : i32, i32
  }
  func.func @transform_4(%arg0: i32) -> (i32, i32) {
    %c0_i32 = arith.constant 0 : i32
    %c0_i32_0 = arith.constant 0 : i32
    %c0_i32_1 = arith.constant 0 : i32
    return %c0_i32, %c0_i32_0 : i32, i32
  }
}

</mosaic_0001>

<llo_original>
// kernel: temporal_encoder_forward.1
$region0: #{temporal_encoder_forward.1}
  #allocation0 [shape = 'u32[]', space=smem, size = 0x4, offset = 0x4, fixed_abs, tag = 'smem constant byte address 0x4 - core index']
  #allocation1 [shape = 'u32[144,128]{1,0:T(1,128)}', space=vmem, size = 0x12000, scoped, tag = 'internal scratch']
  #allocation2 [shape = 'f32[2,32]{1,0:T(2,128)}', space=vmem, size = 0x400, scoped, tag = 'scratch operand']
  #allocation3 [shape = 'f32[2,32]{1,0:T(2,128)}', space=vmem, size = 0x400, scoped, tag = 'scratch operand']
  #allocation4 [shape = 'f32[2,32]{1,0:T(2,128)}', space=vmem, size = 0x400, scoped, tag = 'scratch operand']
  #allocation5 [shape = 'f32[2,32]{1,0:T(2,128)}', space=vmem, size = 0x400, scoped, tag = 'scratch operand']
  #allocation6 [shape = 'bf16[2,64]{1,0:T(2,128)(2,1)}', space=vmem, size = 0x200, scoped, tag = 'scratch operand']
  %s0 = inlined_call_operand.vmem [shape: f32[8,2,128], index: 0, kind: input, shape index: {}]
  %s1 = inlined_call_operand.vmem [shape: bf16[32,128], index: 1, kind: input, shape index: {}]
  %s2 = inlined_call_operand.vmem [shape: bf16[64,128], index: 2, kind: input, shape index: {}]
  %s3 = inlined_call_operand.vmem [shape: f32[1,128], index: 3, kind: input, shape index: {}]
  %s4 = inlined_call_operand.hbm [shape: f32[2,32], index: 4, kind: output, shape index: {}]
  %s5 = sld [smem:[#allocation0]]
  $region34: #{temporal_encoder_forward.1} parent=0
    _
  %s7 = ssub.s32 1, %s5
  %s8 = scalar_select 0, %s7, %s5
  $region1: #{temporal_encoder_forward.1} parent=0
    #allocation7 [shape = 'u8[1024]{0}', space=vmem, size = 0x400, scoped, tag = 'output window, operand 0, single buffered']
    #allocation8 [shape = 's32[1]{0}', space=sflag, size = 0x4, scoped, tag = 'scoped memory for temporal_encoder_forward.1']
    %9 = vsyncpa [#allocation8], 0
    // Predicated region
    $region2: #{temporal_encoder_forward.1} parent=1 // pred_check
      _
    $region3: #{temporal_encoder_forward.1} parent=1 // pred_check_branch
      %11 = sbr.rel (0) target = $region5
    $region4: #{temporal_encoder_forward.1} parent=1 // pred_region
      _
    $region5: #{temporal_encoder_forward.1} parent=1 // pred_fallthru
      _
    // Predicated region
    $region6: #{temporal_encoder_forward.1} parent=1 // pred_check
      _
    $region7: #{temporal_encoder_forward.1} parent=1 // pred_check_branch
      %13 = sbr.rel (0) target = $region9
    $region8: #{temporal_encoder_forward.1} parent=1 // pred_region
      _
    $region9: #{temporal_encoder_forward.1} parent=1 // pred_fallthru
      _
    // Predicated region
    $region10: #{temporal_encoder_forward.1} parent=1 // pred_check
      _
    $region11: #{temporal_encoder_forward.1} parent=1 // pred_check_branch
      %15 = sbr.rel (0) target = $region13
    $region12: #{temporal_encoder_forward.1} parent=1 // pred_region
      _
    $region13: #{temporal_encoder_forward.1} parent=1 // pred_fallthru
      _
    // Predicated region
    $region14: #{temporal_encoder_forward.1} parent=1 // pred_check
      _
    $region15: #{temporal_encoder_forward.1} parent=1 // pred_check_branch
      %17 = sbr.rel (0) target = $region17
    $region16: #{temporal_encoder_forward.1} parent=1 // pred_region
      _
    $region17: #{temporal_encoder_forward.1} parent=1 // pred_fallthru
      _
    %p19 = scmp.eq.s32.totalorder 0, 0
    // Predicated region
    $region18: #{temporal_encoder_forward.1} parent=1 // pred_check
      %p20 = pneg %p19
    $region19: #{temporal_encoder_forward.1} parent=1 // pred_check_branch
      %22 = sbr.rel (%p20) target = $region21
    $region20: #{temporal_encoder_forward.1} parent=1 // pred_region
      %vm23 = vcmask 254976
      %24 = vst.msk [vmem:[#allocation2] sm:$0x3] %vm23, 0.0
      %25 = vst.msk [vmem:[#allocation3] sm:$0x3] %vm23, 0.0
      %26 = vst.msk [vmem:[#allocation4] sm:$0x3] %vm23, 0.0
      %27 = vst.msk [vmem:[#allocation5] sm:$0x3] %vm23, 0.0
    $region21: #{temporal_encoder_forward.1} parent=1 // pred_fallthru
      _
    %v28 = vld [vmem:[%s1] sm:$0xf]
    %v29 = vld [vmem:[%s1 + $0x4] sm:$0xf]
    %v30 = vld [vmem:[%s1 + $0x8] sm:$0xf]
    %v31 = vld [vmem:[%s1 + $0xc] sm:$0xf]
    %v32 = vld [vmem:[%s2] sm:$0xf]
    %v33 = vld [vmem:[%s2 + $0x4] sm:$0xf]
    %v34 = vld [vmem:[%s2 + $0x8] sm:$0xf]
    %v35 = vld [vmem:[%s2 + $0xc] sm:$0xf]
    %v36 = vld [vmem:[%s2 + $0x10] sm:$0xf]
    %v37 = vld [vmem:[%s2 + $0x14] sm:$0xf]
    %v38 = vld [vmem:[%s2 + $0x18] sm:$0xf]
    %v39 = vld [vmem:[%s2 + $0x1c] sm:$0xf]
    %v40 = vld [vmem:[%s3] sm:$0x1]
    %v41 = vld [vmem:[#allocation2] sm:$0x3]
    %v42 = vld [vmem:[#allocation3] sm:$0x3]
    %v43 = vld [vmem:[#allocation4] sm:$0x3]
    %v44 = vld [vmem:[#allocation5] sm:$0x3]
    %v45 = vld [vmem:[%s0] sm:$0x3]
    %v46 = vpack.c.bf16 %v41, %v41
    %v51 = vunpack.c.l.b16 %v28
    %v52 = vunpack.c.l.b16 %v29
    %v53 = vunpack.c.l.b16 %v30
    %v54 = vunpack.c.l.b16 %v31
    %v55 = vpack.c.b16 %v52, %v51
    %v56 = vpack.c.b16 %v54, %v53
    %vm59 = vcmask 261120
    %v61 = vsel %vm59, %v46, 0
    %63 = vmatprep.subr.bf16.mxu0 0
    %64 = vmatpush1.bf16.msra.mxu0 %v55
    %65 = vmatprep.subr.bf16.mxu0 0
    %66 = vmatpush1.bf16.msra.mxu0 %v56
    %67 = vmatprep.subr.bf16.mxu0 0
    %68 = vmatpush1.bf16.msra.mxu0 0
    %69 = vmatprep.subr.bf16.mxu0 0
    %70 = vmatpush1.bf16.msra.mxu0 0
    %71 = vmatprep.subr.bf16.mxu0 0
    %72 = vmatpush1.bf16.msra.mxu0 0
    %73 = vmatprep.subr.bf16.mxu0 0
    %74 = vmatpush1.bf16.msra.mxu0 0
    %75 = vmatprep.subr.bf16.mxu0 0
    %76 = vmatpush1.bf16.msra.mxu0 0
    %77 = vmatprep.subr.bf16.mxu0 0
    %78 = vmatpush1.bf16.msra.mxu0 0
    %79 = vmatprep.subr.bf16.mxu0 0
    %80 = vmatpush1.bf16.msra.mxu0 0
    %81 = vmatprep.subr.bf16.mxu0 0
    %82 = vmatpush1.bf16.msra.mxu0 0
    %83 = vmatprep.subr.bf16.mxu0 0
    %84 = vmatpush1.bf16.msra.mxu0 0
    %85 = vmatprep.subr.bf16.mxu0 0
    %86 = vmatpush1.bf16.msra.mxu0 0
    %87 = vmatprep.subr.bf16.mxu0 0
    %88 = vmatpush1.bf16.msra.mxu0 0
    %89 = vmatprep.subr.bf16.mxu0 0
    %90 = vmatpush1.bf16.msra.mxu0 0
    %91 = vmatprep.subr.bf16.mxu0 0
    %92 = vmatpush1.bf16.msra.mxu0 0
    %93 = vmatprep.subr.bf16.mxu0 0
    %94 = vmatpush1.bf16.msra.mxu0 0
    %95 = vmatprep.mubr.bf16.mxu0 0
    %96 = vmatmul.mubr.bf16.gmra.mrb[0].mxu0 %v61
    %v97 = vpop.f32.mrb[0].mxu0
    %v98 = vadd.f32 0.0, %v97
    %v99 = vpop.f32.mrb[0].mxu0
    %v100 = vpop.f32.mrb[0].mxu0
    %v101 = vpop.f32.mrb[0].mxu0
    %102 = vdwg.mxu0
    %v103 = vadd.f32 %v45, %v98
    %v104 = vxor.u32 %v103, 2147483648
    %v105 = vmul.f32 %v104, 1.442695
    %v106 = vpow.pop %v105
    %v107 = vadd.f32 %v106, 1.0
    %v108 = vrcp.pop %v107
    %v109 = vmul.f32 1.0, %v108
    %v110 = vtanh.pop %v103
    %112 = vrot.lane.b32.xlu0 %v42, 32
    %v113 = vpop.permute.xlu0 %112
    %v115 = vmul.f32 %v109, %v113
    %117 = vrot.lane.b32.xlu0 %v110, 64
    %v118 = vpop.permute.xlu0 %117
    %v120 = vmul.f32 %v109, %v118
    %122 = vrot.lane.b32.xlu0 %v120, 32
    %v123 = vpop.permute.xlu0 %122
    %v125 = vadd.f32 %v115, %v123
    %v126 = vtanh.pop %v125
    %128 = vrot.lane.b32.xlu0 %v126, 64
    %v129 = vpop.permute.xlu0 %128
    %v131 = vmul.f32 %v109, %v129
    %v132 = vpack.c.bf16 %v131, %v131
    %v135 = vunpack.c.l.s4 1966171168
    %v136 = vunpack.c.0.s8 %v135
    %v137 = vlaneseq
    %v138 = vshrl.u32 %v137, 7
    %v139 = vsub.s32 %v136, %v138
    %v140 = vrot.slane %v132, %v139
    %v142 = vunpack.c.l.s4 1966171168
    %v143 = vunpack.c.0.s8 %v142
    %v144 = vlaneseq
    %v145 = vshrl.u32 %v144, 7
    %v146 = vsub.s32 %v143, %v145
    %v147 = vrot.slane %v140, %v146
    %148 = vrot.lane.b32.xlu0 %v147, 32
    %v149 = vpop.permute.xlu0 %148
    %vm151 = vcmask 253952
    %152 = vst.msk [vmem:[#allocation6] sm:$0x1] %vm151, %v149
    %v153 = vpack.c.bf16 %v43, %v43
    %v156 = vunpack.c.l.s4 1966171168
    %v157 = vunpack.c.0.s8 %v156
    %v158 = vlaneseq
    %v159 = vshrl.u32 %v158, 7
    %v160 = vsub.s32 %v157, %v159
    %v161 = vrot.slane %v153, %v160
    %v163 = vunpack.c.l.s4 1966171168
    %v164 = vunpack.c.0.s8 %v163
    %v165 = vlaneseq
    %v166 = vshrl.u32 %v165, 7
    %v167 = vsub.s32 %v164, %v166
    %v168 = vrot.slane %v161, %v167
    %169 = vrot.lane.b32.xlu0 %v168, 32
    %v170 = vpop.permute.xlu0 %169
    %vm172 = vcmask 516352
    %173 = vst.msk [vmem:[#allocation6] sm:$0x1] %vm172, %v170
    %v174 = vld [vmem:[#allocation6] sm:$0x1]
    %v176 = vlaneseq
    %v177 = vshrl.u32 %v176, 7
    %v178 = vsub.s32 0, %v177
    %v179 = vrot.slane %v40, %v178
    %v189 = vunpack.c.l.b16 %v32
    %v190 = vunpack.c.l.b16 %v33
    %v191 = vunpack.c.l.b16 %v34
    %v192 = vunpack.c.l.b16 %v35
    %v193 = vunpack.c.l.b16 %v36
    %v194 = vunpack.c.l.b16 %v37
    %v195 = vunpack.c.l.b16 %v38
    %v196 = vunpack.c.l.b16 %v39
    %v197 = vpack.c.b16 %v190, %v189
    %v198 = vpack.c.b16 %v192, %v191
    %v199 = vpack.c.b16 %v194, %v193
    %v200 = vpack.c.b16 %v196, %v195
    %vm205 = vcmask 523264
    %v207 = vsel %vm205, %v174, 0
    %209 = vmatprep.subr.bf16.mxu0 0
    %210 = vmatpush1.bf16.msra.mxu0 %v197
    %211 = vmatprep.subr.bf16.mxu0 0
    %212 = vmatpush1.bf16.msra.mxu0 %v198
    %213 = vmatprep.subr.bf16.mxu0 0
    %214 = vmatpush1.bf16.msra.mxu0 %v199
    %215 = vmatprep.subr.bf16.mxu0 0
    %216 = vmatpush1.bf16.msra.mxu0 %v200
    %217 = vmatprep.subr.bf16.mxu0 0
    %218 = vmatpush1.bf16.msra.mxu0 0
    %219 = vmatprep.subr.bf16.mxu0 0
    %220 = vmatpush1.bf16.msra.mxu0 0
    %221 = vmatprep.subr.bf16.mxu0 0
    %222 = vmatpush1.bf16.msra.mxu0 0
    %223 = vmatprep.subr.bf16.mxu0 0
    %224 = vmatpush1.bf16.msra.mxu0 0
    %225 = vmatprep.subr.bf16.mxu0 0
    %226 = vmatpush1.bf16.msra.mxu0 0
    %227 = vmatprep.subr.bf16.mxu0 0
    %228 = vmatpush1.bf16.msra.mxu0 0
    %229 = vmatprep.subr.bf16.mxu0 0
    %230 = vmatpush1.bf16.msra.mxu0 0
    %231 = vmatprep.subr.bf16.mxu0 0
    %232 = vmatpush1.bf16.msra.mxu0 0
    %233 = vmatprep.subr.bf16.mxu0 0
    %234 = vmatpush1.bf16.msra.mxu0 0
    %235 = vmatprep.subr.bf16.mxu0 0
    %236 = vmatpush1.bf16.msra.mxu0 0
    %237 = vmatprep.subr.bf16.mxu0 0
    %238 = vmatpush1.bf16.msra.mxu0 0
    %239 = vmatprep.subr.bf16.mxu0 0
    %240 = vmatpush1.bf16.msra.mxu0 0
    %241 = vmatprep.mubr.bf16.mxu0 0
    %242 = vmatmul.mubr.bf16.gmra.mrb[0].mxu0 %v207
    %v243 = vpop.f32.mrb[0].mxu0
    %v244 = vadd.f32 %v179, %v243
    %v245 = vpop.f32.mrb[0].mxu0
    %v246 = vpop.f32.mrb[0].mxu0
    %v247 = vpop.f32.mrb[0].mxu0
    %248 = vdwg.mxu0
    %v249 = vxor.u32 %v244, 2147483648
    %v250 = vmul.f32 %v249, 1.442695
    %v251 = vpow.pop %v250
    %v252 = vadd.f32 %v251, 1.0
    %v253 = vrcp.pop %v252
    %v254 = vmul.f32 1.0, %v253
    %v255 = vtanh.pop %v244
    %257 = vrot.lane.b32.xlu0 %v44, 32
    %v258 = vpop.permute.xlu0 %257
    %v260 = vmul.f32 %v254, %v258
    %262 = vrot.lane.b32.xlu0 %v255, 64
    %v263 = vpop.permute.xlu0 %262
    %v265 = vmul.f32 %v254, %v263
    %267 = vrot.lane.b32.xlu0 %v265, 32
    %v268 = vpop.permute.xlu0 %267
    %v270 = vadd.f32 %v260, %v268
    %v271 = vtanh.pop %v270
    %273 = vrot.lane.b32.xlu0 %v271, 64
    %v274 = vpop.permute.xlu0 %273
    %v276 = vmul.f32 %v254, %v274
    %s277 = scalar_lea.vmem %s0, 2
    %v278 = vld [vmem:[%s277] sm:$0x3]
    %279 = vrot.lane.b32.xlu0 %v132, 32
    %v280 = vpop.permute.xlu0 %279
    %v282 = vsel %vm59, %v280, 0
    %284 = vmatprep.subr.bf16.mxu0 0
    %285 = vmatpush1.bf16.msra.mxu0 %v55
    %286 = vmatprep.subr.bf16.mxu0 0
    %287 = vmatpush1.bf16.msra.mxu0 %v56
    %288 = vmatprep.subr.bf16.mxu0 0
    %289 = vmatpush1.bf16.msra.mxu0 0
    %290 = vmatprep.subr.bf16.mxu0 0
    %291 = vmatpush1.bf16.msra.mxu0 0
    %292 = vmatprep.subr.bf16.mxu0 0
    %293 = vmatpush1.bf16.msra.mxu0 0
    %294 = vmatprep.subr.bf16.mxu0 0
    %295 = vmatpush1.bf16.msra.mxu0 0
    %296 = vmatprep.subr.bf16.mxu0 0
    %297 = vmatpush1.bf16.msra.mxu0 0
    %298 = vmatprep.subr.bf16.mxu0 0
    %299 = vmatpush1.bf16.msra.mxu0 0
    %300 = vmatprep.subr.bf16.mxu0 0
    %301 = vmatpush1.bf16.msra.mxu0 0
    %302 = vmatprep.subr.bf16.mxu0 0
    %303 = vmatpush1.bf16.msra.mxu0 0
    %304 = vmatprep.subr.bf16.mxu0 0
    %305 = vmatpush1.bf16.msra.mxu0 0
    %306 = vmatprep.subr.bf16.mxu0 0
    %307 = vmatpush1.bf16.msra.mxu0 0
    %308 = vmatprep.subr.bf16.mxu0 0
    %309 = vmatpush1.bf16.msra.mxu0 0
    %310 = vmatprep.subr.bf16.mxu0 0
    %311 = vmatpush1.bf16.msra.mxu0 0
    %312 = vmatprep.subr.bf16.mxu0 0
    %313 = vmatpush1.bf16.msra.mxu0 0
    %314 = vmatprep.subr.bf16.mxu0 0
    %315 = vmatpush1.bf16.msra.mxu0 0
    %316 = vmatprep.mubr.bf16.mxu0 0
    %317 = vmatmul.mubr.bf16.gmra.mrb[0].mxu0 %v282
    %v318 = vpop.f32.mrb[0].mxu0
    %v319 = vadd.f32 0.0, %v318
    %v320 = vpop.f32.mrb[0].mxu0
    %v321 = vpop.f32.mrb[0].mxu0
    %v322 = vpop.f32.mrb[0].mxu0
    %323 = vdwg.mxu0
    %v324 = vadd.f32 %v278, %v319
    %v325 = vxor.u32 %v324, 2147483648
    %v326 = vmul.f32 %v325, 1.442695
    %v327 = vpow.pop %v326
    %v328 = vadd.f32 %v327, 1.0
    %v329 = vrcp.pop %v328
    %v330 = vmul.f32 1.0, %v329
    %v331 = vtanh.pop %v324
    %v332 = vmul.f32 %v330, %v125
    %334 = vrot.lane.b32.xlu0 %v331, 64
    %v335 = vpop.permute.xlu0 %334
    %v337 = vmul.f32 %v330, %v335
    %339 = vrot.lane.b32.xlu0 %v337, 32
    %v340 = vpop.permute.xlu0 %339
    %v342 = vadd.f32 %v332, %v340
    %v343 = vtanh.pop %v342
    %345 = vrot.lane.b32.xlu0 %v343, 64
    %v346 = vpop.permute.xlu0 %345
    %v348 = vmul.f32 %v330, %v346
    %v349 = vpack.c.bf16 %v348, %v348
    %v352 = vunpack.c.l.s4 1966171168
    %v353 = vunpack.c.0.s8 %v352
    %v354 = vlaneseq
    %v355 = vshrl.u32 %v354, 7
    %v356 = vsub.s32 %v353, %v355
    %v357 = vrot.slane %v349, %v356
    %v359 = vunpack.c.l.s4 1966171168
    %v360 = vunpack.c.0.s8 %v359
    %v361 = vlaneseq
    %v362 = vshrl.u32 %v361, 7
    %v363 = vsub.s32 %v360, %v362
    %v364 = vrot.slane %v357, %v363
    %365 = vrot.lane.b32.xlu0 %v364, 32
    %v366 = vpop.permute.xlu0 %365
    %368 = vst.msk [vmem:[#allocation6] sm:$0x1] %vm151, %v366
    %v369 = vpack.c.bf16 %v276, %v276
    %v372 = vunpack.c.l.s4 1966171168
    %v373 = vunpack.c.0.s8 %v372
    %v374 = vlaneseq
    %v375 = vshrl.u32 %v374, 7
    %v376 = vsub.s32 %v373, %v375
    %v377 = vrot.slane %v369, %v376
    %v379 = vunpack.c.l.s4 1966171168
    %v380 = vunpack.c.0.s8 %v379
    %v381 = vlaneseq
    %v382 = vshrl.u32 %v381, 7
    %v383 = vsub.s32 %v380, %v382
    %v384 = vrot.slane %v377, %v383
    %385 = vrot.lane.b32.xlu0 %v384, 64
    %v386 = vpop.permute.xlu0 %385
    %388 = vst.msk [vmem:[#allocation6] sm:$0x1] %vm172, %v386
    %v389 = vld [vmem:[#allocation6] sm:$0x1]
    %v391 = vsel %vm205, %v389, 0
    %393 = vmatprep.subr.bf16.mxu0 0
    %394 = vmatpush1.bf16.msra.mxu0 %v197
    %395 = vmatprep.subr.bf16.mxu0 0
    %396 = vmatpush1.bf16.msra.mxu0 %v198
    %397 = vmatprep.subr.bf16.mxu0 0
    %398 = vmatpush1.bf16.msra.mxu0 %v199
    %399 = vmatprep.subr.bf16.mxu0 0
    %400 = vmatpush1.bf16.msra.mxu0 %v200
    %401 = vmatprep.subr.bf16.mxu0 0
    %402 = vmatpush1.bf16.msra.mxu0 0
    %403 = vmatprep.subr.bf16.mxu0 0
    %404 = vmatpush1.bf16.msra.mxu0 0
    %405 = vmatprep.subr.bf16.mxu0 0
    %406 = vmatpush1.bf16.msra.mxu0 0
    %407 = vmatprep.subr.bf16.mxu0 0
    %408 = vmatpush1.bf16.msra.mxu0 0
    %409 = vmatprep.subr.bf16.mxu0 0
    %410 = vmatpush1.bf16.msra.mxu0 0
    %411 = vmatprep.subr.bf16.mxu0 0
    %412 = vmatpush1.bf16.msra.mxu0 0
    %413 = vmatprep.subr.bf16.mxu0 0
    %414 = vmatpush1.bf16.msra.mxu0 0
    %415 = vmatprep.subr.bf16.mxu0 0
    %416 = vmatpush1.bf16.msra.mxu0 0
    %417 = vmatprep.subr.bf16.mxu0 0
    %418 = vmatpush1.bf16.msra.mxu0 0
    %419 = vmatprep.subr.bf16.mxu0 0
    %420 = vmatpush1.bf16.msra.mxu0 0
    %421 = vmatprep.subr.bf16.mxu0 0
    %422 = vmatpush1.bf16.msra.mxu0 0
    %423 = vmatprep.subr.bf16.mxu0 0
    %424 = vmatpush1.bf16.msra.mxu0 0
    %425 = vmatprep.mubr.bf16.mxu0 0
    %426 = vmatmul.mubr.bf16.gmra.mrb[0].mxu0 %v391
    %v427 = vpop.f32.mrb[0].mxu0
    %v428 = vadd.f32 %v179, %v427
    %v429 = vpop.f32.mrb[0].mxu0
    %v430 = vpop.f32.mrb[0].mxu0
    %v431 = vpop.f32.mrb[0].mxu0
    %432 = vdwg.mxu0
    %v433 = vxor.u32 %v428, 2147483648
    %v434 = vmul.f32 %v433, 1.442695
    %v435 = vpow.pop %v434
    %v436 = vadd.f32 %v435, 1.0
    %v437 = vrcp.pop %v436
    %v438 = vmul.f32 1.0, %v437
    %v439 = vtanh.pop %v428
    %v440 = vmul.f32 %v438, %v270
    %442 = vrot.lane.b32.xlu0 %v439, 64
    %v443 = vpop.permute.xlu0 %442
    %v445 = vmul.f32 %v438, %v443
    %447 = vrot.lane.b32.xlu0 %v445, 32
    %v448 = vpop.permute.xlu0 %447
    %v450 = vadd.f32 %v440, %v448
    %v451 = vtanh.pop %v450
    %453 = vrot.lane.b32.xlu0 %v451, 64
    %v454 = vpop.permute.xlu0 %453
    %v456 = vmul.f32 %v438, %v454
    %s457 = scalar_lea.vmem %s0, 4
    %v458 = vld [vmem:[%s457] sm:$0x3]
    %459 = vrot.lane.b32.xlu0 %v349, 32
    %v460 = vpop.permute.xlu0 %459
    %v462 = vsel %vm59, %v460, 0
    %464 = vmatprep.subr.bf16.mxu0 0
    %465 = vmatpush1.bf16.msra.mxu0 %v55
    %466 = vmatprep.subr.bf16.mxu0 0
    %467 = vmatpush1.bf16.msra.mxu0 %v56
    %468 = vmatprep.subr.bf16.mxu0 0
    %469 = vmatpush1.bf16.msra.mxu0 0
    %470 = vmatprep.subr.bf16.mxu0 0
    %471 = vmatpush1.bf16.msra.mxu0 0
    %472 = vmatprep.subr.bf16.mxu0 0
    %473 = vmatpush1.bf16.msra.mxu0 0
    %474 = vmatprep.subr.bf16.mxu0 0
    %475 = vmatpush1.bf16.msra.mxu0 0
    %476 = vmatprep.subr.bf16.mxu0 0
    %477 = vmatpush1.bf16.msra.mxu0 0
    %478 = vmatprep.subr.bf16.mxu0 0
    %479 = vmatpush1.bf16.msra.mxu0 0
    %480 = vmatprep.subr.bf16.mxu0 0
    %481 = vmatpush1.bf16.msra.mxu0 0
    %482 = vmatprep.subr.bf16.mxu0 0
    %483 = vmatpush1.bf16.msra.mxu0 0
    %484 = vmatprep.subr.bf16.mxu0 0
    %485 = vmatpush1.bf16.msra.mxu0 0
    %486 = vmatprep.subr.bf16.mxu0 0
    %487 = vmatpush1.bf16.msra.mxu0 0
    %488 = vmatprep.subr.bf16.mxu0 0
    %489 = vmatpush1.bf16.msra.mxu0 0
    %490 = vmatprep.subr.bf16.mxu0 0
    %491 = vmatpush1.bf16.msra.mxu0 0
    %492 = vmatprep.subr.bf16.mxu0 0
    %493 = vmatpush1.bf16.msra.mxu0 0
    %494 = vmatprep.subr.bf16.mxu0 0
    %495 = vmatpush1.bf16.msra.mxu0 0
    %496 = vmatprep.mubr.bf16.mxu0 0
    %497 = vmatmul.mubr.bf16.gmra.mrb[0].mxu0 %v462
    %v498 = vpop.f32.mrb[0].mxu0
    %v499 = vadd.f32 0.0, %v498
    %v500 = vpop.f32.mrb[0].mxu0
    %v501 = vpop.f32.mrb[0].mxu0
    %v502 = vpop.f32.mrb[0].mxu0
    %503 = vdwg.mxu0
    %v504 = vadd.f32 %v458, %v499
    %v505 = vxor.u32 %v504, 2147483648
    %v506 = vmul.f32 %v505, 1.442695
    %v507 = vpow.pop %v506
    %v508 = vadd.f32 %v507, 1.0
    %v509 = vrcp.pop %v508
    %v510 = vmul.f32 1.0, %v509
    %v511 = vtanh.pop %v504
    %v512 = vmul.f32 %v510, %v342
    %514 = vrot.lane.b32.xlu0 %v511, 64
    %v515 = vpop.permute.xlu0 %514
    %v517 = vmul.f32 %v510, %v515
    %519 = vrot.lane.b32.xlu0 %v517, 32
    %v520 = vpop.permute.xlu0 %519
    %v522 = vadd.f32 %v512, %v520
    %v523 = vtanh.pop %v522
    %525 = vrot.lane.b32.xlu0 %v523, 64
    %v526 = vpop.permute.xlu0 %525
    %v528 = vmul.f32 %v510, %v526
    %v529 = vpack.c.bf16 %v528, %v528
    %v532 = vunpack.c.l.s4 1966171168
    %v533 = vunpack.c.0.s8 %v532
    %v534 = vlaneseq
    %v535 = vshrl.u32 %v534, 7
    %v536 = vsub.s32 %v533, %v535
    %v537 = vrot.slane %v529, %v536
    %v539 = vunpack.c.l.s4 1966171168
    %v540 = vunpack.c.0.s8 %v539
    %v541 = vlaneseq
    %v542 = vshrl.u32 %v541, 7
    %v543 = vsub.s32 %v540, %v542
    %v544 = vrot.slane %v537, %v543
    %545 = vrot.lane.b32.xlu0 %v544, 32
    %v546 = vpop.permute.xlu0 %545
    %548 = vst.msk [vmem:[#allocation6] sm:$0x1] %vm151, %v546
    %v549 = vpack.c.bf16 %v456, %v456
    %v552 = vunpack.c.l.s4 1966171168
    %v553 = vunpack.c.0.s8 %v552
    %v554 = vlaneseq
    %v555 = vshrl.u32 %v554, 7
    %v556 = vsub.s32 %v553, %v555
    %v557 = vrot.slane %v549, %v556
    %v559 = vunpack.c.l.s4 1966171168
    %v560 = vunpack.c.0.s8 %v559
    %v561 = vlaneseq
    %v562 = vshrl.u32 %v561, 7
    %v563 = vsub.s32 %v560, %v562
    %v564 = vrot.slane %v557, %v563
    %565 = vrot.lane.b32.xlu0 %v564, 64
    %v566 = vpop.permute.xlu0 %565
    %568 = vst.msk [vmem:[#allocation6] sm:$0x1] %vm172, %v566
    %v569 = vld [vmem:[#allocation6] sm:$0x1]
    %v571 = vsel %vm205, %v569, 0
    %573 = vmatprep.subr.bf16.mxu0 0
    %574 = vmatpush1.bf16.msra.mxu0 %v197
    %575 = vmatprep.subr.bf16.mxu0 0
    %576 = vmatpush1.bf16.msra.mxu0 %v198
    %577 = vmatprep.subr.bf16.mxu0 0
    %578 = vmatpush1.bf16.msra.mxu0 %v199
    %579 = vmatprep.subr.bf16.mxu0 0
    %580 = vmatpush1.bf16.msra.mxu0 %v200
    %581 = vmatprep.subr.bf16.mxu0 0
    %582 = vmatpush1.bf16.msra.mxu0 0
    %583 = vmatprep.subr.bf16.mxu0 0
    %584 = vmatpush1.bf16.msra.mxu0 0
    %585 = vmatprep.subr.bf16.mxu0 0
    %586 = vmatpush1.bf16.msra.mxu0 0
    %587 = vmatprep.subr.bf16.mxu0 0
    %588 = vmatpush1.bf16.msra.mxu0 0
    %589 = vmatprep.subr.bf16.mxu0 0
    %590 = vmatpush1.bf16.msra.mxu0 0
    %591 = vmatprep.subr.bf16.mxu0 0
    %592 = vmatpush1.bf16.msra.mxu0 0
    %593 = vmatprep.subr.bf16.mxu0 0
    %594 = vmatpush1.bf16.msra.mxu0 0
    %595 = vmatprep.subr.bf16.mxu0 0
    %596 = vmatpush1.bf16.msra.mxu0 0
    %597 = vmatprep.subr.bf16.mxu0 0
    %598 = vmatpush1.bf16.msra.mxu0 0
    %599 = vmatprep.subr.bf16.mxu0 0
    %600 = vmatpush1.bf16.msra.mxu0 0
    %601 = vmatprep.subr.bf16.mxu0 0
    %602 = vmatpush1.bf16.msra.mxu0 0
    %603 = vmatprep.subr.bf16.mxu0 0
    %604 = vmatpush1.bf16.msra.mxu0 0
    %605 = vmatprep.mubr.bf16.mxu0 0
    %606 = vmatmul.mubr.bf16.gmra.mrb[0].mxu0 %v571
    %v607 = vpop.f32.mrb[0].mxu0
    %v608 = vadd.f32 %v179, %v607
    %v609 = vpop.f32.mrb[0].mxu0
    %v610 = vpop.f32.mrb[0].mxu0
    %v611 = vpop.f32.mrb[0].mxu0
    %612 = vdwg.mxu0
    %v613 = vxor.u32 %v608, 2147483648
    %v614 = vmul.f32 %v613, 1.442695
    %v615 = vpow.pop %v614
    %v616 = vadd.f32 %v615, 1.0
    %v617 = vrcp.pop %v616
    %v618 = vmul.f32 1.0, %v617
    %v619 = vtanh.pop %v608
    %v620 = vmul.f32 %v618, %v450
    %622 = vrot.lane.b32.xlu0 %v619, 64
    %v623 = vpop.permute.xlu0 %622
    %v625 = vmul.f32 %v618, %v623
    %627 = vrot.lane.b32.xlu0 %v625, 32
    %v628 = vpop.permute.xlu0 %627
    %v630 = vadd.f32 %v620, %v628
    %v631 = vtanh.pop %v630
    %633 = vrot.lane.b32.xlu0 %v631, 64
    %v634 = vpop.permute.xlu0 %633
    %v636 = vmul.f32 %v618, %v634
    %s637 = scalar_lea.vmem %s0, 6
    %v638 = vld [vmem:[%s637] sm:$0x3]
    %639 = vrot.lane.b32.xlu0 %v529, 32
    %v640 = vpop.permute.xlu0 %639
    %v642 = vsel %vm59, %v640, 0
    %644 = vmatprep.subr.bf16.mxu0 0
    %645 = vmatpush1.bf16.msra.mxu0 %v55
    %646 = vmatprep.subr.bf16.mxu0 0
    %647 = vmatpush1.bf16.msra.mxu0 %v56
    %648 = vmatprep.subr.bf16.mxu0 0
    %649 = vmatpush1.bf16.msra.mxu0 0
    %650 = vmatprep.subr.bf16.mxu0 0
    %651 = vmatpush1.bf16.msra.mxu0 0
    %652 = vmatprep.subr.bf16.mxu0 0
    %653 = vmatpush1.bf16.msra.mxu0 0
    %654 = vmatprep.subr.bf16.mxu0 0
    %655 = vmatpush1.bf16.msra.mxu0 0
    %656 = vmatprep.subr.bf16.mxu0 0
    %657 = vmatpush1.bf16.msra.mxu0 0
    %658 = vmatprep.subr.bf16.mxu0 0
    %659 = vmatpush1.bf16.msra.mxu0 0
    %660 = vmatprep.subr.bf16.mxu0 0
    %661 = vmatpush1.bf16.msra.mxu0 0
    %662 = vmatprep.subr.bf16.mxu0 0
    %663 = vmatpush1.bf16.msra.mxu0 0
    %664 = vmatprep.subr.bf16.mxu0 0
    %665 = vmatpush1.bf16.msra.mxu0 0
    %666 = vmatprep.subr.bf16.mxu0 0
    %667 = vmatpush1.bf16.msra.mxu0 0
    %668 = vmatprep.subr.bf16.mxu0 0
    %669 = vmatpush1.bf16.msra.mxu0 0
    %670 = vmatprep.subr.bf16.mxu0 0
    %671 = vmatpush1.bf16.msra.mxu0 0
    %672 = vmatprep.subr.bf16.mxu0 0
    %673 = vmatpush1.bf16.msra.mxu0 0
    %674 = vmatprep.subr.bf16.mxu0 0
    %675 = vmatpush1.bf16.msra.mxu0 0
    %676 = vmatprep.mubr.bf16.mxu0 0
    %677 = vmatmul.mubr.bf16.gmra.mrb[0].mxu0 %v642
    %v678 = vpop.f32.mrb[0].mxu0
    %v679 = vadd.f32 0.0, %v678
    %v680 = vpop.f32.mrb[0].mxu0
    %v681 = vpop.f32.mrb[0].mxu0
    %v682 = vpop.f32.mrb[0].mxu0
    %683 = vdwg.mxu0
    %v684 = vadd.f32 %v638, %v679
    %v685 = vxor.u32 %v684, 2147483648
    %v686 = vmul.f32 %v685, 1.442695
    %v687 = vpow.pop %v686
    %v688 = vadd.f32 %v687, 1.0
    %v689 = vrcp.pop %v688
    %v690 = vmul.f32 1.0, %v689
    %v691 = vtanh.pop %v684
    %v692 = vmul.f32 %v690, %v522
    %694 = vrot.lane.b32.xlu0 %v691, 64
    %v695 = vpop.permute.xlu0 %694
    %v697 = vmul.f32 %v690, %v695
    %699 = vrot.lane.b32.xlu0 %v697, 32
    %v700 = vpop.permute.xlu0 %699
    %v702 = vadd.f32 %v692, %v700
    %v703 = vtanh.pop %v702
    %705 = vrot.lane.b32.xlu0 %v703, 64
    %v706 = vpop.permute.xlu0 %705
    %v708 = vmul.f32 %v690, %v706
    %v709 = vpack.c.bf16 %v708, %v708
    %v712 = vunpack.c.l.s4 1966171168
    %v713 = vunpack.c.0.s8 %v712
    %v714 = vlaneseq
    %v715 = vshrl.u32 %v714, 7
    %v716 = vsub.s32 %v713, %v715
    %v717 = vrot.slane %v709, %v716
    %v719 = vunpack.c.l.s4 1966171168
    %v720 = vunpack.c.0.s8 %v719
    %v721 = vlaneseq
    %v722 = vshrl.u32 %v721, 7
    %v723 = vsub.s32 %v720, %v722
    %v724 = vrot.slane %v717, %v723
    %725 = vrot.lane.b32.xlu0 %v724, 32
    %v726 = vpop.permute.xlu0 %725
    %728 = vst.msk [vmem:[#allocation6] sm:$0x1] %vm151, %v726
    %v729 = vpack.c.bf16 %v636, %v636
    %v732 = vunpack.c.l.s4 1966171168
    %v733 = vunpack.c.0.s8 %v732
    %v734 = vlaneseq
    %v735 = vshrl.u32 %v734, 7
    %v736 = vsub.s32 %v733, %v735
    %v737 = vrot.slane %v729, %v736
    %v739 = vunpack.c.l.s4 1966171168
    %v740 = vunpack.c.0.s8 %v739
    %v741 = vlaneseq
    %v742 = vshrl.u32 %v741, 7
    %v743 = vsub.s32 %v740, %v742
    %v744 = vrot.slane %v737, %v743
    %745 = vrot.lane.b32.xlu0 %v744, 64
    %v746 = vpop.permute.xlu0 %745
    %748 = vst.msk [vmem:[#allocation6] sm:$0x1] %vm172, %v746
    %v749 = vld [vmem:[#allocation6] sm:$0x1]
    %v751 = vsel %vm205, %v749, 0
    %753 = vmatprep.subr.bf16.mxu0 0
    %754 = vmatpush1.bf16.msra.mxu0 %v197
    %755 = vmatprep.subr.bf16.mxu0 0
    %756 = vmatpush1.bf16.msra.mxu0 %v198
    %757 = vmatprep.subr.bf16.mxu0 0
    %758 = vmatpush1.bf16.msra.mxu0 %v199
    %759 = vmatprep.subr.bf16.mxu0 0
    %760 = vmatpush1.bf16.msra.mxu0 %v200
    %761 = vmatprep.subr.bf16.mxu0 0
    %762 = vmatpush1.bf16.msra.mxu0 0
    %763 = vmatprep.subr.bf16.mxu0 0
    %764 = vmatpush1.bf16.msra.mxu0 0
    %765 = vmatprep.subr.bf16.mxu0 0
    %766 = vmatpush1.bf16.msra.mxu0 0
    %767 = vmatprep.subr.bf16.mxu0 0
    %768 = vmatpush1.bf16.msra.mxu0 0
    %769 = vmatprep.subr.bf16.mxu0 0
    %770 = vmatpush1.bf16.msra.mxu0 0
    %771 = vmatprep.subr.bf16.mxu0 0
    %772 = vmatpush1.bf16.msra.mxu0 0
    %773 = vmatprep.subr.bf16.mxu0 0
    %774 = vmatpush1.bf16.msra.mxu0 0
    %775 = vmatprep.subr.bf16.mxu0 0
    %776 = vmatpush1.bf16.msra.mxu0 0
    %777 = vmatprep.subr.bf16.mxu0 0
    %778 = vmatpush1.bf16.msra.mxu0 0
    %779 = vmatprep.subr.bf16.mxu0 0
    %780 = vmatpush1.bf16.msra.mxu0 0
    %781 = vmatprep.subr.bf16.mxu0 0
    %782 = vmatpush1.bf16.msra.mxu0 0
    %783 = vmatprep.subr.bf16.mxu0 0
    %784 = vmatpush1.bf16.msra.mxu0 0
    %785 = vmatprep.mubr.bf16.mxu0 0
    %786 = vmatmul.mubr.bf16.gmra.mrb[0].mxu0 %v751
    %v787 = vpop.f32.mrb[0].mxu0
    %v788 = vadd.f32 %v179, %v787
    %v789 = vpop.f32.mrb[0].mxu0
    %v790 = vpop.f32.mrb[0].mxu0
    %v791 = vpop.f32.mrb[0].mxu0
    %792 = vdwg.mxu0
    %v793 = vxor.u32 %v788, 2147483648
    %v794 = vmul.f32 %v793, 1.442695
    %v795 = vpow.pop %v794
    %v796 = vadd.f32 %v795, 1.0
    %v797 = vrcp.pop %v796
    %v798 = vmul.f32 1.0, %v797
    %v799 = vtanh.pop %v788
    %v800 = vmul.f32 %v798, %v630
    %802 = vrot.lane.b32.xlu0 %v799, 64
    %v803 = vpop.permute.xlu0 %802
    %v805 = vmul.f32 %v798, %v803
    %807 = vrot.lane.b32.xlu0 %v805, 32
    %v808 = vpop.permute.xlu0 %807
    %v810 = vadd.f32 %v800, %v808
    %v811 = vtanh.pop %v810
    %813 = vrot.lane.b32.xlu0 %v811, 64
    %v814 = vpop.permute.xlu0 %813
    %v816 = vmul.f32 %v798, %v814
    %s817 = scalar_lea.vmem %s0, 8
    %v818 = vld [vmem:[%s817] sm:$0x3]
    %819 = vrot.lane.b32.xlu0 %v709, 32
    %v820 = vpop.permute.xlu0 %819
    %v822 = vsel %vm59, %v820, 0
    %824 = vmatprep.subr.bf16.mxu0 0
    %825 = vmatpush1.bf16.msra.mxu0 %v55
    %826 = vmatprep.subr.bf16.mxu0 0
    %827 = vmatpush1.bf16.msra.mxu0 %v56
    %828 = vmatprep.subr.bf16.mxu0 0
    %829 = vmatpush1.bf16.msra.mxu0 0
    %830 = vmatprep.subr.bf16.mxu0 0
    %831 = vmatpush1.bf16.msra.mxu0 0
    %832 = vmatprep.subr.bf16.mxu0 0
    %833 = vmatpush1.bf16.msra.mxu0 0
    %834 = vmatprep.subr.bf16.mxu0 0
    %835 = vmatpush1.bf16.msra.mxu0 0
    %836 = vmatprep.subr.bf16.mxu0 0
    %837 = vmatpush1.bf16.msra.mxu0 0
    %838 = vmatprep.subr.bf16.mxu0 0
    %839 = vmatpush1.bf16.msra.mxu0 0
    %840 = vmatprep.subr.bf16.mxu0 0
    %841 = vmatpush1.bf16.msra.mxu0 0
    %842 = vmatprep.subr.bf16.mxu0 0
    %843 = vmatpush1.bf16.msra.mxu0 0
    %844 = vmatprep.subr.bf16.mxu0 0
    %845 = vmatpush1.bf16.msra.mxu0 0
    %846 = vmatprep.subr.bf16.mxu0 0
    %847 = vmatpush1.bf16.msra.mxu0 0
    %848 = vmatprep.subr.bf16.mxu0 0
    %849 = vmatpush1.bf16.msra.mxu0 0
    %850 = vmatprep.subr.bf16.mxu0 0
    %851 = vmatpush1.bf16.msra.mxu0 0
    %852 = vmatprep.subr.bf16.mxu0 0
    %853 = vmatpush1.bf16.msra.mxu0 0
    %854 = vmatprep.subr.bf16.mxu0 0
    %855 = vmatpush1.bf16.msra.mxu0 0
    %856 = vmatprep.mubr.bf16.mxu0 0
    %857 = vmatmul.mubr.bf16.gmra.mrb[0].mxu0 %v822
    %v858 = vpop.f32.mrb[0].mxu0
    %v859 = vadd.f32 0.0, %v858
    %v860 = vpop.f32.mrb[0].mxu0
    %v861 = vpop.f32.mrb[0].mxu0
    %v862 = vpop.f32.mrb[0].mxu0
    %863 = vdwg.mxu0
    %v864 = vadd.f32 %v818, %v859
    %v865 = vxor.u32 %v864, 2147483648
    %v866 = vmul.f32 %v865, 1.442695
    %v867 = vpow.pop %v866
    %v868 = vadd.f32 %v867, 1.0
    %v869 = vrcp.pop %v868
    %v870 = vmul.f32 1.0, %v869
    %v871 = vtanh.pop %v864
    %v872 = vmul.f32 %v870, %v702
    %874 = vrot.lane.b32.xlu0 %v871, 64
    %v875 = vpop.permute.xlu0 %874
    %v877 = vmul.f32 %v870, %v875
    %879 = vrot.lane.b32.xlu0 %v877, 32
    %v880 = vpop.permute.xlu0 %879
    %v882 = vadd.f32 %v872, %v880
    %v883 = vtanh.pop %v882
    %885 = vrot.lane.b32.xlu0 %v883, 64
    %v886 = vpop.permute.xlu0 %885
    %v888 = vmul.f32 %v870, %v886
    %v889 = vpack.c.bf16 %v888, %v888
    %v892 = vunpack.c.l.s4 1966171168
    %v893 = vunpack.c.0.s8 %v892
    %v894 = vlaneseq
    %v895 = vshrl.u32 %v894, 7
    %v896 = vsub.s32 %v893, %v895
    %v897 = vrot.slane %v889, %v896
    %v899 = vunpack.c.l.s4 1966171168
    %v900 = vunpack.c.0.s8 %v899
    %v901 = vlaneseq
    %v902 = vshrl.u32 %v901, 7
    %v903 = vsub.s32 %v900, %v902
    %v904 = vrot.slane %v897, %v903
    %905 = vrot.lane.b32.xlu0 %v904, 32
    %v906 = vpop.permute.xlu0 %905
    %908 = vst.msk [vmem:[#allocation6] sm:$0x1] %vm151, %v906
    %v909 = vpack.c.bf16 %v816, %v816
    %v912 = vunpack.c.l.s4 1966171168
    %v913 = vunpack.c.0.s8 %v912
    %v914 = vlaneseq
    %v915 = vshrl.u32 %v914, 7
    %v916 = vsub.s32 %v913, %v915
    %v917 = vrot.slane %v909, %v916
    %v919 = vunpack.c.l.s4 1966171168
    %v920 = vunpack.c.0.s8 %v919
    %v921 = vlaneseq
    %v922 = vshrl.u32 %v921, 7
    %v923 = vsub.s32 %v920, %v922
    %v924 = vrot.slane %v917, %v923
    %925 = vrot.lane.b32.xlu0 %v924, 64
    %v926 = vpop.permute.xlu0 %925
    %928 = vst.msk [vmem:[#allocation6] sm:$0x1] %vm172, %v926
    %v929 = vld [vmem:[#allocation6] sm:$0x1]
    %v931 = vsel %vm205, %v929, 0
    %933 = vmatprep.subr.bf16.mxu0 0
    %934 = vmatpush1.bf16.msra.mxu0 %v197
    %935 = vmatprep.subr.bf16.mxu0 0
    %936 = vmatpush1.bf16.msra.mxu0 %v198
    %937 = vmatprep.subr.bf16.mxu0 0
    %938 = vmatpush1.bf16.msra.mxu0 %v199
    %939 = vmatprep.subr.bf16.mxu0 0
    %940 = vmatpush1.bf16.msra.mxu0 %v200
    %941 = vmatprep.subr.bf16.mxu0 0
    %942 = vmatpush1.bf16.msra.mxu0 0
    %943 = vmatprep.subr.bf16.mxu0 0
    %944 = vmatpush1.bf16.msra.mxu0 0
    %945 = vmatprep.subr.bf16.mxu0 0
    %946 = vmatpush1.bf16.msra.mxu0 0
    %947 = vmatprep.subr.bf16.mxu0 0
    %948 = vmatpush1.bf16.msra.mxu0 0
    %949 = vmatprep.subr.bf16.mxu0 0
    %950 = vmatpush1.bf16.msra.mxu0 0
    %951 = vmatprep.subr.bf16.mxu0 0
    %952 = vmatpush1.bf16.msra.mxu0 0
    %953 = vmatprep.subr.bf16.mxu0 0
    %954 = vmatpush1.bf16.msra.mxu0 0
    %955 = vmatprep.subr.bf16.mxu0 0
    %956 = vmatpush1.bf16.msra.mxu0 0
    %957 = vmatprep.subr.bf16.mxu0 0
    %958 = vmatpush1.bf16.msra.mxu0 0
    %959 = vmatprep.subr.bf16.mxu0 0
    %960 = vmatpush1.bf16.msra.mxu0 0
    %961 = vmatprep.subr.bf16.mxu0 0
    %962 = vmatpush1.bf16.msra.mxu0 0
    %963 = vmatprep.subr.bf16.mxu0 0
    %964 = vmatpush1.bf16.msra.mxu0 0
    %965 = vmatprep.mubr.bf16.mxu0 0
    %966 = vmatmul.mubr.bf16.gmra.mrb[0].mxu0 %v931
    %v967 = vpop.f32.mrb[0].mxu0
    %v968 = vadd.f32 %v179, %v967
    %v969 = vpop.f32.mrb[0].mxu0
    %v970 = vpop.f32.mrb[0].mxu0
    %v971 = vpop.f32.mrb[0].mxu0
    %972 = vdwg.mxu0
    %v973 = vxor.u32 %v968, 2147483648
    %v974 = vmul.f32 %v973, 1.442695
    %v975 = vpow.pop %v974
    %v976 = vadd.f32 %v975, 1.0
    %v977 = vrcp.pop %v976
    %v978 = vmul.f32 1.0, %v977
    %v979 = vtanh.pop %v968
    %v980 = vmul.f32 %v978, %v810
    %982 = vrot.lane.b32.xlu0 %v979, 64
    %v983 = vpop.permute.xlu0 %982
    %v985 = vmul.f32 %v978, %v983
    %987 = vrot.lane.b32.xlu0 %v985, 32
    %v988 = vpop.permute.xlu0 %987
    %v990 = vadd.f32 %v980, %v988
    %v991 = vtanh.pop %v990
    %993 = vrot.lane.b32.xlu0 %v991, 64
    %v994 = vpop.permute.xlu0 %993
    %v996 = vmul.f32 %v978, %v994
    %s997 = scalar_lea.vmem %s0, 10
    %v998 = vld [vmem:[%s997] sm:$0x3]
    %999 = vrot.lane.b32.xlu0 %v889, 32
    %v1000 = vpop.permute.xlu0 %999
    %v1002 = vsel %vm59, %v1000, 0
    %1004 = vmatprep.subr.bf16.mxu0 0
    %1005 = vmatpush1.bf16.msra.mxu0 %v55
    %1006 = vmatprep.subr.bf16.mxu0 0
    %1007 = vmatpush1.bf16.msra.mxu0 %v56
    %1008 = vmatprep.subr.bf16.mxu0 0
    %1009 = vmatpush1.bf16.msra.mxu0 0
    %1010 = vmatprep.subr.bf16.mxu0 0
    %1011 = vmatpush1.bf16.msra.mxu0 0
    %1012 = vmatprep.subr.bf16.mxu0 0
    %1013 = vmatpush1.bf16.msra.mxu0 0
    %1014 = vmatprep.subr.bf16.mxu0 0
    %1015 = vmatpush1.bf16.msra.mxu0 0
    %1016 = vmatprep.subr.bf16.mxu0 0
    %1017 = vmatpush1.bf16.msra.mxu0 0
    %1018 = vmatprep.subr.bf16.mxu0 0
    %1019 = vmatpush1.bf16.msra.mxu0 0
    %1020 = vmatprep.subr.bf16.mxu0 0
    %1021 = vmatpush1.bf16.msra.mxu0 0
    %1022 = vmatprep.subr.bf16.mxu0 0
    %1023 = vmatpush1.bf16.msra.mxu0 0
    %1024 = vmatprep.subr.bf16.mxu0 0
    %1025 = vmatpush1.bf16.msra.mxu0 0
    %1026 = vmatprep.subr.bf16.mxu0 0
    %1027 = vmatpush1.bf16.msra.mxu0 0
    %1028 = vmatprep.subr.bf16.mxu0 0
    %1029 = vmatpush1.bf16.msra.mxu0 0
    %1030 = vmatprep.subr.bf16.mxu0 0
    %1031 = vmatpush1.bf16.msra.mxu0 0
    %1032 = vmatprep.subr.bf16.mxu0 0
    %1033 = vmatpush1.bf16.msra.mxu0 0
    %1034 = vmatprep.subr.bf16.mxu0 0
    %1035 = vmatpush1.bf16.msra.mxu0 0
    %1036 = vmatprep.mubr.bf16.mxu0 0
    %1037 = vmatmul.mubr.bf16.gmra.mrb[0].mxu0 %v1002
    %v1038 = vpop.f32.mrb[0].mxu0
    %v1039 = vadd.f32 0.0, %v1038
    %v1040 = vpop.f32.mrb[0].mxu0
    %v1041 = vpop.f32.mrb[0].mxu0
    %v1042 = vpop.f32.mrb[0].mxu0
    %1043 = vdwg.mxu0
    %v1044 = vadd.f32 %v998, %v1039
    %v1045 = vxor.u32 %v1044, 2147483648
    %v1046 = vmul.f32 %v1045, 1.442695
    %v1047 = vpow.pop %v1046
    %v1048 = vadd.f32 %v1047, 1.0
    %v1049 = vrcp.pop %v1048
    %v1050 = vmul.f32 1.0, %v1049
    %v1051 = vtanh.pop %v1044
    %v1052 = vmul.f32 %v1050, %v882
    %1054 = vrot.lane.b32.xlu0 %v1051, 64
    %v1055 = vpop.permute.xlu0 %1054
    %v1057 = vmul.f32 %v1050, %v1055
    %1059 = vrot.lane.b32.xlu0 %v1057, 32
    %v1060 = vpop.permute.xlu0 %1059
    %v1062 = vadd.f32 %v1052, %v1060
    %v1063 = vtanh.pop %v1062
    %1065 = vrot.lane.b32.xlu0 %v1063, 64
    %v1066 = vpop.permute.xlu0 %1065
    %v1068 = vmul.f32 %v1050, %v1066
    %v1069 = vpack.c.bf16 %v1068, %v1068
    %v1072 = vunpack.c.l.s4 1966171168
    %v1073 = vunpack.c.0.s8 %v1072
    %v1074 = vlaneseq
    %v1075 = vshrl.u32 %v1074, 7
    %v1076 = vsub.s32 %v1073, %v1075
    %v1077 = vrot.slane %v1069, %v1076
    %v1079 = vunpack.c.l.s4 1966171168
    %v1080 = vunpack.c.0.s8 %v1079
    %v1081 = vlaneseq
    %v1082 = vshrl.u32 %v1081, 7
    %v1083 = vsub.s32 %v1080, %v1082
    %v1084 = vrot.slane %v1077, %v1083
    %1085 = vrot.lane.b32.xlu0 %v1084, 32
    %v1086 = vpop.permute.xlu0 %1085
    %1088 = vst.msk [vmem:[#allocation6] sm:$0x1] %vm151, %v1086
    %v1089 = vpack.c.bf16 %v996, %v996
    %v1092 = vunpack.c.l.s4 1966171168
    %v1093 = vunpack.c.0.s8 %v1092
    %v1094 = vlaneseq
    %v1095 = vshrl.u32 %v1094, 7
    %v1096 = vsub.s32 %v1093, %v1095
    %v1097 = vrot.slane %v1089, %v1096
    %v1099 = vunpack.c.l.s4 1966171168
    %v1100 = vunpack.c.0.s8 %v1099
    %v1101 = vlaneseq
    %v1102 = vshrl.u32 %v1101, 7
    %v1103 = vsub.s32 %v1100, %v1102
    %v1104 = vrot.slane %v1097, %v1103
    %1105 = vrot.lane.b32.xlu0 %v1104, 64
    %v1106 = vpop.permute.xlu0 %1105
    %1108 = vst.msk [vmem:[#allocation6] sm:$0x1] %vm172, %v1106
    %v1109 = vld [vmem:[#allocation6] sm:$0x1]
    %v1111 = vsel %vm205, %v1109, 0
    %1113 = vmatprep.subr.bf16.mxu0 0
    %1114 = vmatpush1.bf16.msra.mxu0 %v197
    %1115 = vmatprep.subr.bf16.mxu0 0
    %1116 = vmatpush1.bf16.msra.mxu0 %v198
    %1117 = vmatprep.subr.bf16.mxu0 0
    %1118 = vmatpush1.bf16.msra.mxu0 %v199
    %1119 = vmatprep.subr.bf16.mxu0 0
    %1120 = vmatpush1.bf16.msra.mxu0 %v200
    %1121 = vmatprep.subr.bf16.mxu0 0
    %1122 = vmatpush1.bf16.msra.mxu0 0
    %1123 = vmatprep.subr.bf16.mxu0 0
    %1124 = vmatpush1.bf16.msra.mxu0 0
    %1125 = vmatprep.subr.bf16.mxu0 0
    %1126 = vmatpush1.bf16.msra.mxu0 0
    %1127 = vmatprep.subr.bf16.mxu0 0
    %1128 = vmatpush1.bf16.msra.mxu0 0
    %1129 = vmatprep.subr.bf16.mxu0 0
    %1130 = vmatpush1.bf16.msra.mxu0 0
    %1131 = vmatprep.subr.bf16.mxu0 0
    %1132 = vmatpush1.bf16.msra.mxu0 0
    %1133 = vmatprep.subr.bf16.mxu0 0
    %1134 = vmatpush1.bf16.msra.mxu0 0
    %1135 = vmatprep.subr.bf16.mxu0 0
    %1136 = vmatpush1.bf16.msra.mxu0 0
    %1137 = vmatprep.subr.bf16.mxu0 0
    %1138 = vmatpush1.bf16.msra.mxu0 0
    %1139 = vmatprep.subr.bf16.mxu0 0
    %1140 = vmatpush1.bf16.msra.mxu0 0
    %1141 = vmatprep.subr.bf16.mxu0 0
    %1142 = vmatpush1.bf16.msra.mxu0 0
    %1143 = vmatprep.subr.bf16.mxu0 0
    %1144 = vmatpush1.bf16.msra.mxu0 0
    %1145 = vmatprep.mubr.bf16.mxu0 0
    %1146 = vmatmul.mubr.bf16.gmra.mrb[0].mxu0 %v1111
    %v1147 = vpop.f32.mrb[0].mxu0
    %v1148 = vadd.f32 %v179, %v1147
    %v1149 = vpop.f32.mrb[0].mxu0
    %v1150 = vpop.f32.mrb[0].mxu0
    %v1151 = vpop.f32.mrb[0].mxu0
    %1152 = vdwg.mxu0
    %v1153 = vxor.u32 %v1148, 2147483648
    %v1154 = vmul.f32 %v1153, 1.442695
    %v1155 = vpow.pop %v1154
    %v1156 = vadd.f32 %v1155, 1.0
    %v1157 = vrcp.pop %v1156
    %v1158 = vmul.f32 1.0, %v1157
    %v1159 = vtanh.pop %v1148
    %v1160 = vmul.f32 %v1158, %v990
    %1162 = vrot.lane.b32.xlu0 %v1159, 64
    %v1163 = vpop.permute.xlu0 %1162
    %v1165 = vmul.f32 %v1158, %v1163
    %1167 = vrot.lane.b32.xlu0 %v1165, 32
    %v1168 = vpop.permute.xlu0 %1167
    %v1170 = vadd.f32 %v1160, %v1168
    %v1171 = vtanh.pop %v1170
    %1173 = vrot.lane.b32.xlu0 %v1171, 64
    %v1174 = vpop.permute.xlu0 %1173
    %v1176 = vmul.f32 %v1158, %v1174
    %s1177 = scalar_lea.vmem %s0, 12
    %v1178 = vld [vmem:[%s1177] sm:$0x3]
    %1179 = vrot.lane.b32.xlu0 %v1069, 32
    %v1180 = vpop.permute.xlu0 %1179
    %v1182 = vsel %vm59, %v1180, 0
    %1184 = vmatprep.subr.bf16.mxu0 0
    %1185 = vmatpush1.bf16.msra.mxu0 %v55
    %1186 = vmatprep.subr.bf16.mxu0 0
    %1187 = vmatpush1.bf16.msra.mxu0 %v56
    %1188 = vmatprep.subr.bf16.mxu0 0
    %1189 = vmatpush1.bf16.msra.mxu0 0
    %1190 = vmatprep.subr.bf16.mxu0 0
    %1191 = vmatpush1.bf16.msra.mxu0 0
    %1192 = vmatprep.subr.bf16.mxu0 0
    %1193 = vmatpush1.bf16.msra.mxu0 0
    %1194 = vmatprep.subr.bf16.mxu0 0
    %1195 = vmatpush1.bf16.msra.mxu0 0
    %1196 = vmatprep.subr.bf16.mxu0 0
    %1197 = vmatpush1.bf16.msra.mxu0 0
    %1198 = vmatprep.subr.bf16.mxu0 0
    %1199 = vmatpush1.bf16.msra.mxu0 0
    %1200 = vmatprep.subr.bf16.mxu0 0
    %1201 = vmatpush1.bf16.msra.mxu0 0
    %1202 = vmatprep.subr.bf16.mxu0 0
    %1203 = vmatpush1.bf16.msra.mxu0 0
    %1204 = vmatprep.subr.bf16.mxu0 0
    %1205 = vmatpush1.bf16.msra.mxu0 0
    %1206 = vmatprep.subr.bf16.mxu0 0
    %1207 = vmatpush1.bf16.msra.mxu0 0
    %1208 = vmatprep.subr.bf16.mxu0 0
    %1209 = vmatpush1.bf16.msra.mxu0 0
    %1210 = vmatprep.subr.bf16.mxu0 0
    %1211 = vmatpush1.bf16.msra.mxu0 0
    %1212 = vmatprep.subr.bf16.mxu0 0
    %1213 = vmatpush1.bf16.msra.mxu0 0
    %1214 = vmatprep.subr.bf16.mxu0 0
    %1215 = vmatpush1.bf16.msra.mxu0 0
    %1216 = vmatprep.mubr.bf16.mxu0 0
    %1217 = vmatmul.mubr.bf16.gmra.mrb[0].mxu0 %v1182
    %v1218 = vpop.f32.mrb[0].mxu0
    %v1219 = vadd.f32 0.0, %v1218
    %v1220 = vpop.f32.mrb[0].mxu0
    %v1221 = vpop.f32.mrb[0].mxu0
    %v1222 = vpop.f32.mrb[0].mxu0
    %1223 = vdwg.mxu0
    %v1224 = vadd.f32 %v1178, %v1219
    %v1225 = vxor.u32 %v1224, 2147483648
    %v1226 = vmul.f32 %v1225, 1.442695
    %v1227 = vpow.pop %v1226
    %v1228 = vadd.f32 %v1227, 1.0
    %v1229 = vrcp.pop %v1228
    %v1230 = vmul.f32 1.0, %v1229
    %v1231 = vtanh.pop %v1224
    %v1232 = vmul.f32 %v1230, %v1062
    %1234 = vrot.lane.b32.xlu0 %v1231, 64
    %v1235 = vpop.permute.xlu0 %1234
    %v1237 = vmul.f32 %v1230, %v1235
    %1239 = vrot.lane.b32.xlu0 %v1237, 32
    %v1240 = vpop.permute.xlu0 %1239
    %v1242 = vadd.f32 %v1232, %v1240
    %v1243 = vtanh.pop %v1242
    %1245 = vrot.lane.b32.xlu0 %v1243, 64
    %v1246 = vpop.permute.xlu0 %1245
    %v1248 = vmul.f32 %v1230, %v1246
    %v1249 = vpack.c.bf16 %v1248, %v1248
    %v1252 = vunpack.c.l.s4 1966171168
    %v1253 = vunpack.c.0.s8 %v1252
    %v1254 = vlaneseq
    %v1255 = vshrl.u32 %v1254, 7
    %v1256 = vsub.s32 %v1253, %v1255
    %v1257 = vrot.slane %v1249, %v1256
    %v1259 = vunpack.c.l.s4 1966171168
    %v1260 = vunpack.c.0.s8 %v1259
    %v1261 = vlaneseq
    %v1262 = vshrl.u32 %v1261, 7
    %v1263 = vsub.s32 %v1260, %v1262
    %v1264 = vrot.slane %v1257, %v1263
    %1265 = vrot.lane.b32.xlu0 %v1264, 32
    %v1266 = vpop.permute.xlu0 %1265
    %1268 = vst.msk [vmem:[#allocation6] sm:$0x1] %vm151, %v1266
    %v1269 = vpack.c.bf16 %v1176, %v1176
    %v1272 = vunpack.c.l.s4 1966171168
    %v1273 = vunpack.c.0.s8 %v1272
    %v1274 = vlaneseq
    %v1275 = vshrl.u32 %v1274, 7
    %v1276 = vsub.s32 %v1273, %v1275
    %v1277 = vrot.slane %v1269, %v1276
    %v1279 = vunpack.c.l.s4 1966171168
    %v1280 = vunpack.c.0.s8 %v1279
    %v1281 = vlaneseq
    %v1282 = vshrl.u32 %v1281, 7
    %v1283 = vsub.s32 %v1280, %v1282
    %v1284 = vrot.slane %v1277, %v1283
    %1285 = vrot.lane.b32.xlu0 %v1284, 64
    %v1286 = vpop.permute.xlu0 %1285
    %1288 = vst.msk [vmem:[#allocation6] sm:$0x1] %vm172, %v1286
    %v1289 = vld [vmem:[#allocation6] sm:$0x1]
    %v1291 = vsel %vm205, %v1289, 0
    %1293 = vmatprep.subr.bf16.mxu0 0
    %1294 = vmatpush1.bf16.msra.mxu0 %v197
    %1295 = vmatprep.subr.bf16.mxu0 0
    %1296 = vmatpush1.bf16.msra.mxu0 %v198
    %1297 = vmatprep.subr.bf16.mxu0 0
    %1298 = vmatpush1.bf16.msra.mxu0 %v199
    %1299 = vmatprep.subr.bf16.mxu0 0
    %1300 = vmatpush1.bf16.msra.mxu0 %v200
    %1301 = vmatprep.subr.bf16.mxu0 0
    %1302 = vmatpush1.bf16.msra.mxu0 0
    %1303 = vmatprep.subr.bf16.mxu0 0
    %1304 = vmatpush1.bf16.msra.mxu0 0
    %1305 = vmatprep.subr.bf16.mxu0 0
    %1306 = vmatpush1.bf16.msra.mxu0 0
    %1307 = vmatprep.subr.bf16.mxu0 0
    %1308 = vmatpush1.bf16.msra.mxu0 0
    %1309 = vmatprep.subr.bf16.mxu0 0
    %1310 = vmatpush1.bf16.msra.mxu0 0
    %1311 = vmatprep.subr.bf16.mxu0 0
    %1312 = vmatpush1.bf16.msra.mxu0 0
    %1313 = vmatprep.subr.bf16.mxu0 0
    %1314 = vmatpush1.bf16.msra.mxu0 0
    %1315 = vmatprep.subr.bf16.mxu0 0
    %1316 = vmatpush1.bf16.msra.mxu0 0
    %1317 = vmatprep.subr.bf16.mxu0 0
    %1318 = vmatpush1.bf16.msra.mxu0 0
    %1319 = vmatprep.subr.bf16.mxu0 0
    %1320 = vmatpush1.bf16.msra.mxu0 0
    %1321 = vmatprep.subr.bf16.mxu0 0
    %1322 = vmatpush1.bf16.msra.mxu0 0
    %1323 = vmatprep.subr.bf16.mxu0 0
    %1324 = vmatpush1.bf16.msra.mxu0 0
    %1325 = vmatprep.mubr.bf16.mxu0 0
    %1326 = vmatmul.mubr.bf16.gmra.mrb[0].mxu0 %v1291
    %v1327 = vpop.f32.mrb[0].mxu0
    %v1328 = vadd.f32 %v179, %v1327
    %v1329 = vpop.f32.mrb[0].mxu0
    %v1330 = vpop.f32.mrb[0].mxu0
    %v1331 = vpop.f32.mrb[0].mxu0
    %1332 = vdwg.mxu0
    %v1333 = vxor.u32 %v1328, 2147483648
    %v1334 = vmul.f32 %v1333, 1.442695
    %v1335 = vpow.pop %v1334
    %v1336 = vadd.f32 %v1335, 1.0
    %v1337 = vrcp.pop %v1336
    %v1338 = vmul.f32 1.0, %v1337
    %v1339 = vtanh.pop %v1328
    %v1340 = vmul.f32 %v1338, %v1170
    %1342 = vrot.lane.b32.xlu0 %v1339, 64
    %v1343 = vpop.permute.xlu0 %1342
    %v1345 = vmul.f32 %v1338, %v1343
    %1347 = vrot.lane.b32.xlu0 %v1345, 32
    %v1348 = vpop.permute.xlu0 %1347
    %v1350 = vadd.f32 %v1340, %v1348
    %v1351 = vtanh.pop %v1350
    %1353 = vrot.lane.b32.xlu0 %v1351, 64
    %v1354 = vpop.permute.xlu0 %1353
    %v1356 = vmul.f32 %v1338, %v1354
    %s1357 = scalar_lea.vmem %s0, 14
    %v1358 = vld [vmem:[%s1357] sm:$0x3]
    %1359 = vrot.lane.b32.xlu0 %v1249, 32
    %v1360 = vpop.permute.xlu0 %1359
    %v1362 = vsel %vm59, %v1360, 0
    %1364 = vmatprep.subr.bf16.mxu0 0
    %1365 = vmatpush1.bf16.msra.mxu0 %v55
    %1366 = vmatprep.subr.bf16.mxu0 0
    %1367 = vmatpush1.bf16.msra.mxu0 %v56
    %1368 = vmatprep.subr.bf16.mxu0 0
    %1369 = vmatpush1.bf16.msra.mxu0 0
    %1370 = vmatprep.subr.bf16.mxu0 0
    %1371 = vmatpush1.bf16.msra.mxu0 0
    %1372 = vmatprep.subr.bf16.mxu0 0
    %1373 = vmatpush1.bf16.msra.mxu0 0
    %1374 = vmatprep.subr.bf16.mxu0 0
    %1375 = vmatpush1.bf16.msra.mxu0 0
    %1376 = vmatprep.subr.bf16.mxu0 0
    %1377 = vmatpush1.bf16.msra.mxu0 0
    %1378 = vmatprep.subr.bf16.mxu0 0
    %1379 = vmatpush1.bf16.msra.mxu0 0
    %1380 = vmatprep.subr.bf16.mxu0 0
    %1381 = vmatpush1.bf16.msra.mxu0 0
    %1382 = vmatprep.subr.bf16.mxu0 0
    %1383 = vmatpush1.bf16.msra.mxu0 0
    %1384 = vmatprep.subr.bf16.mxu0 0
    %1385 = vmatpush1.bf16.msra.mxu0 0
    %1386 = vmatprep.subr.bf16.mxu0 0
    %1387 = vmatpush1.bf16.msra.mxu0 0
    %1388 = vmatprep.subr.bf16.mxu0 0
    %1389 = vmatpush1.bf16.msra.mxu0 0
    %1390 = vmatprep.subr.bf16.mxu0 0
    %1391 = vmatpush1.bf16.msra.mxu0 0
    %1392 = vmatprep.subr.bf16.mxu0 0
    %1393 = vmatpush1.bf16.msra.mxu0 0
    %1394 = vmatprep.subr.bf16.mxu0 0
    %1395 = vmatpush1.bf16.msra.mxu0 0
    %1396 = vmatprep.mubr.bf16.mxu0 0
    %1397 = vmatmul.mubr.bf16.gmra.mrb[0].mxu0 %v1362
    %v1398 = vpop.f32.mrb[0].mxu0
    %v1399 = vadd.f32 0.0, %v1398
    %v1400 = vpop.f32.mrb[0].mxu0
    %v1401 = vpop.f32.mrb[0].mxu0
    %v1402 = vpop.f32.mrb[0].mxu0
    %1403 = vdwg.mxu0
    %v1404 = vadd.f32 %v1358, %v1399
    %v1405 = vxor.u32 %v1404, 2147483648
    %v1406 = vmul.f32 %v1405, 1.442695
    %v1407 = vpow.pop %v1406
    %v1408 = vadd.f32 %v1407, 1.0
    %v1409 = vrcp.pop %v1408
    %v1410 = vmul.f32 1.0, %v1409
    %v1411 = vtanh.pop %v1404
    %v1412 = vmul.f32 %v1410, %v1242
    %1414 = vrot.lane.b32.xlu0 %v1411, 64
    %v1415 = vpop.permute.xlu0 %1414
    %v1417 = vmul.f32 %v1410, %v1415
    %1419 = vrot.lane.b32.xlu0 %v1417, 32
    %v1420 = vpop.permute.xlu0 %1419
    %v1422 = vadd.f32 %v1412, %v1420
    %v1423 = vtanh.pop %v1422
    %1425 = vrot.lane.b32.xlu0 %v1423, 64
    %v1426 = vpop.permute.xlu0 %1425
    %v1428 = vmul.f32 %v1410, %v1426
    %v1429 = vpack.c.bf16 %v1428, %v1428
    %v1432 = vunpack.c.l.s4 1966171168
    %v1433 = vunpack.c.0.s8 %v1432
    %v1434 = vlaneseq
    %v1435 = vshrl.u32 %v1434, 7
    %v1436 = vsub.s32 %v1433, %v1435
    %v1437 = vrot.slane %v1429, %v1436
    %v1439 = vunpack.c.l.s4 1966171168
    %v1440 = vunpack.c.0.s8 %v1439
    %v1441 = vlaneseq
    %v1442 = vshrl.u32 %v1441, 7
    %v1443 = vsub.s32 %v1440, %v1442
    %v1444 = vrot.slane %v1437, %v1443
    %1445 = vrot.lane.b32.xlu0 %v1444, 32
    %v1446 = vpop.permute.xlu0 %1445
    %1448 = vst.msk [vmem:[#allocation6] sm:$0x1] %vm151, %v1446
    %v1449 = vpack.c.bf16 %v1356, %v1356
    %v1452 = vunpack.c.l.s4 1966171168
    %v1453 = vunpack.c.0.s8 %v1452
    %v1454 = vlaneseq
    %v1455 = vshrl.u32 %v1454, 7
    %v1456 = vsub.s32 %v1453, %v1455
    %v1457 = vrot.slane %v1449, %v1456
    %v1459 = vunpack.c.l.s4 1966171168
    %v1460 = vunpack.c.0.s8 %v1459
    %v1461 = vlaneseq
    %v1462 = vshrl.u32 %v1461, 7
    %v1463 = vsub.s32 %v1460, %v1462
    %v1464 = vrot.slane %v1457, %v1463
    %1465 = vrot.lane.b32.xlu0 %v1464, 64
    %v1466 = vpop.permute.xlu0 %1465
    %1468 = vst.msk [vmem:[#allocation6] sm:$0x1] %vm172, %v1466
    %v1469 = vld [vmem:[#allocation6] sm:$0x1]
    %v1471 = vsel %vm205, %v1469, 0
    %1473 = vmatprep.subr.bf16.mxu0 0
    %1474 = vmatpush1.bf16.msra.mxu0 %v197
    %1475 = vmatprep.subr.bf16.mxu0 0
    %1476 = vmatpush1.bf16.msra.mxu0 %v198
    %1477 = vmatprep.subr.bf16.mxu0 0
    %1478 = vmatpush1.bf16.msra.mxu0 %v199
    %1479 = vmatprep.subr.bf16.mxu0 0
    %1480 = vmatpush1.bf16.msra.mxu0 %v200
    %1481 = vmatprep.subr.bf16.mxu0 0
    %1482 = vmatpush1.bf16.msra.mxu0 0
    %1483 = vmatprep.subr.bf16.mxu0 0
    %1484 = vmatpush1.bf16.msra.mxu0 0
    %1485 = vmatprep.subr.bf16.mxu0 0
    %1486 = vmatpush1.bf16.msra.mxu0 0
    %1487 = vmatprep.subr.bf16.mxu0 0
    %1488 = vmatpush1.bf16.msra.mxu0 0
    %1489 = vmatprep.subr.bf16.mxu0 0
    %1490 = vmatpush1.bf16.msra.mxu0 0
    %1491 = vmatprep.subr.bf16.mxu0 0
    %1492 = vmatpush1.bf16.msra.mxu0 0
    %1493 = vmatprep.subr.bf16.mxu0 0
    %1494 = vmatpush1.bf16.msra.mxu0 0
    %1495 = vmatprep.subr.bf16.mxu0 0
    %1496 = vmatpush1.bf16.msra.mxu0 0
    %1497 = vmatprep.subr.bf16.mxu0 0
    %1498 = vmatpush1.bf16.msra.mxu0 0
    %1499 = vmatprep.subr.bf16.mxu0 0
    %1500 = vmatpush1.bf16.msra.mxu0 0
    %1501 = vmatprep.subr.bf16.mxu0 0
    %1502 = vmatpush1.bf16.msra.mxu0 0
    %1503 = vmatprep.subr.bf16.mxu0 0
    %1504 = vmatpush1.bf16.msra.mxu0 0
    %1505 = vmatprep.mubr.bf16.mxu0 0
    %1506 = vmatmul.mubr.bf16.gmra.mrb[0].mxu0 %v1471
    %v1507 = vpop.f32.mrb[0].mxu0
    %v1508 = vadd.f32 %v179, %v1507
    %v1509 = vpop.f32.mrb[0].mxu0
    %v1510 = vpop.f32.mrb[0].mxu0
    %v1511 = vpop.f32.mrb[0].mxu0
    %1512 = vdwg.mxu0
    %v1513 = vxor.u32 %v1508, 2147483648
    %v1514 = vmul.f32 %v1513, 1.442695
    %v1515 = vpow.pop %v1514
    %v1516 = vadd.f32 %v1515, 1.0
    %v1517 = vrcp.pop %v1516
    %v1518 = vmul.f32 1.0, %v1517
    %v1519 = vtanh.pop %v1508
    %v1520 = vmul.f32 %v1518, %v1350
    %1522 = vrot.lane.b32.xlu0 %v1519, 64
    %v1523 = vpop.permute.xlu0 %1522
    %v1525 = vmul.f32 %v1518, %v1523
    %1527 = vrot.lane.b32.xlu0 %v1525, 32
    %v1528 = vpop.permute.xlu0 %1527
    %v1530 = vadd.f32 %v1520, %v1528
    %v1531 = vtanh.pop %v1530
    %1533 = vrot.lane.b32.xlu0 %v1531, 64
    %v1534 = vpop.permute.xlu0 %1533
    %v1536 = vmul.f32 %v1518, %v1534
    %1538 = vrot.lane.b32.xlu0 %v1428, 32
    %v1539 = vpop.permute.xlu0 %1538
    %vm1541 = vcmask 254976
    %1542 = vst.msk [vmem:[#allocation2] sm:$0x3] %vm1541, %v1539
    %1544 = vrot.lane.b32.xlu0 %v1422, 96
    %v1545 = vpop.permute.xlu0 %1544
    %1547 = vst.msk [vmem:[#allocation3] sm:$0x3] %vm1541, %v1545
    %1549 = vrot.lane.b32.xlu0 %v1536, 32
    %v1550 = vpop.permute.xlu0 %1549
    %1552 = vst.msk [vmem:[#allocation4] sm:$0x3] %vm1541, %v1550
    %1554 = vrot.lane.b32.xlu0 %v1530, 96
    %v1555 = vpop.permute.xlu0 %1554
    %1557 = vst.msk [vmem:[#allocation5] sm:$0x3] %vm1541, %v1555
    // Predicated region
    $region22: #{temporal_encoder_forward.1} parent=1 // pred_check
      %p1558 = pneg %p19
    $region23: #{temporal_encoder_forward.1} parent=1 // pred_check_branch
      %1560 = sbr.rel (%p1558) target = $region25
    $region24: #{temporal_encoder_forward.1} parent=1 // pred_region
      %v1561 = vld [vmem:[#allocation4] sm:$0x3]
      %1562 = vst.msk [vmem:[#allocation7] sm:$0x3] %vm1541, %v1561
    $region25: #{temporal_encoder_forward.1} parent=1 // pred_fallthru
      _
    // Predicated region
    $region26: #{temporal_encoder_forward.1} parent=1 // pred_check
      _
    $region27: #{temporal_encoder_forward.1} parent=1 // pred_check_branch
      %1564 = sbr.rel (0) target = $region29
    $region28: #{temporal_encoder_forward.1} parent=1 // pred_region
      %s1566 = ssub.s32 32, 32
      %1567 = vsyncadd [#allocation8], %s1566
      %s1569 = sshll.u32 [#allocation7], 4
      %s1570 = int_to_ptr.vmem [resolvable:$true] %s1569
      %1572 = dma.vmem_to_hbm [thread:$0]  %s1570, 32, %s4, [#allocation8]
    $region29: #{temporal_encoder_forward.1} parent=1 // pred_fallthru
      _
    // Predicated region
    $region30: #{temporal_encoder_forward.1} parent=1 // pred_check
      _
    $region31: #{temporal_encoder_forward.1} parent=1 // pred_check_branch
      %1574 = sbr.rel (0) target = $region33
    $region32: #{temporal_encoder_forward.1} parent=1 // pred_region
      %1575 = dma.done [#allocation8], 32
    $region33: #{temporal_encoder_forward.1} parent=1 // pred_fallthru
      _
    %1576 = vsyncpa [#allocation8], 1

</llo_original>
